<compile_context>
chip_gen: v7x
topology: tpu7x:2x2x1
jax: 0.10.0
libtpu: 0.0.40
codegen_flags: <defaults>
</compile_context>

<pallas_src>
import functools
import math

import jax
import jax.numpy as jnp
from jax.experimental import pallas as pl
from jax.experimental.pallas import tpu as pltpu


def _round_up(x, m):
    return (x + m - 1) // m * m


@functools.lru_cache(maxsize=None)
def _vmem_limit_bytes():
    """Generation-aware scoped-VMEM limit: above the 16/32 MiB defaults, below physical."""
    cap = 64 * 1024 * 1024  # conservative fallback (v7x physical VMEM per TensorCore)
    try:
        cap = int(getattr(pltpu.get_tpu_info(), "vmem_capacity_bytes", cap))
    except Exception:
        pass
    # v7x (64 MiB phys) -> 48 MiB; v5e/v6e (128 MiB phys) -> 100 MiB.
    return max(32 * 1024 * 1024, min(cap - 16 * 1024 * 1024, 100 * 1024 * 1024))


def _weight_budget_bytes():
    # VMEM budget reserved for (double-buffered) weight blocks inside one kernel.
    return _vmem_limit_bytes() // 2


def _compiler_params(dimension_semantics):
    return pltpu.CompilerParams(
        dimension_semantics=dimension_semantics,
        vmem_limit_bytes=_vmem_limit_bytes(),
    )


def _pick_row_tile(m_rows):
    """Row tile for the (M, d_model) kernels.

    Prefers a tile that divides M exactly (no pad/slice HBM copies), is a multiple of 8
    (sublane), and leaves >= 2 grid steps so both v7x TensorCores get work.
    Returns (tm, m_pad)."""
    best = 0
    for cand in range(8, min(m_rows, 512) + 1, 8):
        if m_rows % cand == 0:
            best = cand
    if best >= 128 or best == m_rows:
        tm, m_pad = best, m_rows
    elif m_rows <= 512:
        tm, m_pad = m_rows, m_rows          # single full-extent block (always a legal shape)
    else:
        tm, m_pad = 256, _round_up(m_rows, 256)   # rare fallback: pad copy accepted
    if m_pad // tm == 1 and tm % 16 == 0:
        tm //= 2                            # keep >= 2 "parallel" steps for v7x megacore
    return tm, m_pad


def _pick_ff_tile(d_ff, d_model):
    """d_ff tile so 2 weights x 2 pipeline buffers x d_model*t_ff*4B fit the budget."""
    max_t = _weight_budget_bytes() // (16 * d_model)
    if d_ff <= max_t or d_ff < 128:
        return d_ff
    t = (min(max_t, d_ff) // 128) * 128
    while t >= 128:
        if d_ff % t == 0:
            return t
        t -= 128
    # TODO(synk): pad d_ff when it has no multiple-of-128 divisor under the budget.
    return d_ff


def _pick_out_tile(d_out, d_in):
    """Output-dim tile for the QKV linear so the (d_in, t_out) weight fits the budget."""
    max_t = _weight_budget_bytes() // (8 * d_in)
    if d_out <= max_t or d_out < 128:
        return d_out
    t = (min(max_t, d_out) // 128) * 128
    while t >= 128:
        if d_out % t == 0:
            return t
        t -= 128
    return d_out


# --------------------------------------------------------------------------------------
# Kernels
# --------------------------------------------------------------------------------------
def _linear_kernel(x_ref, w_ref, b_ref, o_ref):
    # x: (tm, Din), w: (Din, t_out), b: (1, t_out)
    acc = jnp.dot(x_ref[...], w_ref[...], preferred_element_type=jnp.float32)
    o_ref[...] = (acc + b_ref[...]).astype(o_ref.dtype)


def _attn_kernel(qkv_ref, o_ref, *maybe_w_ref, scale, n_heads):
    # qkv_ref: (S, 3*d_model) block for one batch. Heads are sliced on the lane axis, so
    # no XLA- or kernel-level transposes are needed and the output is a lane-dense
    # (S, d_model) slab.
    d_model = qkv_ref.shape[1] // 3
    dk = d_model // n_heads
    qkv = qkv_ref[...]
    head_outs = []
    # TODO(synk): for dk < 128 the per-head matmuls underfill the 256-wide v6e/v7x MXU;
    #             a heads-leading batched dot could recover N-dim utilization.
    for h in range(n_heads):
        q = qkv[:, h * dk:(h + 1) * dk]
        k = qkv[:, d_model + h * dk:d_model + (h + 1) * dk]
        v = qkv[:, 2 * d_model + h * dk:2 * d_model + (h + 1) * dk]
        s = jax.lax.dot_general(q, k, (((1,), (1,)), ((), ())),
                                preferred_element_type=jnp.float32) * scale
        # TODO(synk): masked_fill(mask == 0, -inf) would be applied here when a mask is given.
        m = jnp.max(s, axis=-1, keepdims=True)
        e = jnp.exp(s - m)
        # Per-row reciprocal + S^2 multiplies instead of S^2 full-precision divides.
        p = e * pl.reciprocal(jnp.sum(e, axis=-1, keepdims=True))
        if maybe_w_ref:
            maybe_w_ref[0][h] = p.astype(maybe_w_ref[0].dtype)
        head_outs.append(jnp.dot(p.astype(v.dtype), v,
                                 preferred_element_type=jnp.float32))
    o_ref[...] = jnp.concatenate(head_outs, axis=-1).astype(o_ref.dtype)


def _proj_residual_ln_kernel(a_ref, w_ref, b_ref, res_ref, g_ref, beta_ref, o_ref, *, eps):
    # LayerNorm(res + a @ W + b)     (dropout is identity in eval mode)
    # TODO(synk): tile the (d_model, d_model) projection weight for very large d_model.
    y = jnp.dot(a_ref[...], w_ref[...], preferred_element_type=jnp.float32)
    y = y + b_ref[...] + res_ref[...].astype(jnp.float32)
    mu = jnp.mean(y, axis=-1, keepdims=True)
    var = jnp.mean(jnp.square(y - mu), axis=-1, keepdims=True)
    yn = (y - mu) * jax.lax.rsqrt(var + eps)
    o_ref[...] = (yn * g_ref[...] + beta_ref[...]).astype(o_ref.dtype)


def _ffn_residual_ln_kernel(x_ref, w1_ref, b1_ref, w2_ref, b2_ref, g_ref, beta_ref,
                            o_ref, acc_ref, *, eps):
    # grid = (rows, d_ff chunks); reduction axis (k) innermost / "arbitrary".
    k = pl.program_id(1)

    @pl.when(k == 0)
    def _init():
        # Fold the fc2 bias into the accumulator init (added exactly once).
        acc_ref[...] = jnp.broadcast_to(b2_ref[...].astype(jnp.float32), acc_ref.shape)

    h = jnp.dot(x_ref[...], w1_ref[...], preferred_element_type=jnp.float32) + b1_ref[...]
    h = jnp.maximum(h, 0.0)  # ReLU; dropout is identity in eval mode.
    acc_ref[...] += jnp.dot(h.astype(w2_ref.dtype), w2_ref[...],
                            preferred_element_type=jnp.float32)

    @pl.when(k == pl.num_programs(1) - 1)
    def _finalize():
        y = acc_ref[...] + x_ref[...].astype(jnp.float32)  # residual (same x as FFN input)
        mu = jnp.mean(y, axis=-1, keepdims=True)
        var = jnp.mean(jnp.square(y - mu), axis=-1, keepdims=True)
        yn = (y - mu) * jax.lax.rsqrt(var + eps)
        o_ref[...] = (yn * g_ref[...] + beta_ref[...]).astype(o_ref.dtype)


# --------------------------------------------------------------------------------------
# pallas_call wrappers
# --------------------------------------------------------------------------------------
def _linear(x2d, w, b, *, tm):
    m_pad, d_in = x2d.shape
    d_out = w.shape[1]
    t_out = _pick_out_tile(d_out, d_in)
    return pl.pallas_call(
        _linear_kernel,
        out_shape=jax.ShapeDtypeStruct((m_pad, d_out), x2d.dtype),
        grid_spec=pltpu.PrefetchScalarGridSpec(
            num_scalar_prefetch=0,
            grid=(m_pad // tm, d_out // t_out),
            in_specs=[
                pl.BlockSpec((tm, d_in), lambda i, j: (i, 0)),
                pl.BlockSpec((d_in, t_out), lambda i, j: (0, j)),
                pl.BlockSpec((1, t_out), lambda i, j: (0, j)),
            ],
            out_specs=pl.BlockSpec((tm, t_out), lambda i, j: (i, j)),
        ),
        compiler_params=_compiler_params(("parallel", "parallel")),
    )(x2d, w, b)


def _attention(qkv3d, *, n_heads, return_weights):
    b, s, three_d = qkv3d.shape
    d_model = three_d // 3
    dk = d_model // n_heads
    scale = 1.0 / math.sqrt(dk)

    o_shape = jax.ShapeDtypeStruct((b, s, d_model), qkv3d.dtype)
    o_spec = pl.BlockSpec((None, s, d_model), lambda i: (i, 0, 0))
    if return_weights:
        out_shape = (o_shape,
                     jax.ShapeDtypeStruct((b, n_heads, s, s), qkv3d.dtype))
        out_specs = (o_spec,
                     pl.BlockSpec((None, n_heads, s, s), lambda i: (i, 0, 0, 0)))
    else:
        out_shape = o_shape
        out_specs = o_spec

    res = pl.pallas_call(
        functools.partial(_attn_kernel, scale=scale, n_heads=n_heads),
        out_shape=out_shape,
        grid_spec=pltpu.PrefetchScalarGridSpec(
            num_scalar_prefetch=0,
            grid=(b,),
            in_specs=[pl.BlockSpec((None, s, three_d), lambda i: (i, 0, 0))],
            out_specs=out_specs,
        ),
        compiler_params=_compiler_params(("parallel",)),
    )(qkv3d)
    if return_weights:
        return res[0], res[1]
    return res, None


def _proj_residual_ln(a2d, w, b, res2d, gamma, beta, *, tm, eps):
    m_pad, d_in = a2d.shape
    d_out = w.shape[1]
    return pl.pallas_call(
        functools.partial(_proj_residual_ln_kernel, eps=eps),
        out_shape=jax.ShapeDtypeStruct((m_pad, d_out), a2d.dtype),
        grid_spec=pltpu.PrefetchScalarGridSpec(
            num_scalar_prefetch=0,
            grid=(m_pad // tm,),
            in_specs=[
                pl.BlockSpec((tm, d_in), lambda i: (i, 0)),
                pl.BlockSpec((d_in, d_out), lambda i: (0, 0)),
                pl.BlockSpec((1, d_out), lambda i: (0, 0)),
                pl.BlockSpec((tm, d_out), lambda i: (i, 0)),
                pl.BlockSpec((1, d_out), lambda i: (0, 0)),
                pl.BlockSpec((1, d_out), lambda i: (0, 0)),
            ],
            out_specs=pl.BlockSpec((tm, d_out), lambda i: (i, 0)),
        ),
        compiler_params=_compiler_params(("parallel",)),
    )(a2d, w, b, res2d, gamma, beta)


def _ffn_residual_ln(x2d, w1, b1, w2, b2, gamma, beta, *, tm, eps):
    m_pad, d_model = x2d.shape
    d_ff = w1.shape[1]
    t_ff = _pick_ff_tile(d_ff, d_model)
    return pl.pallas_call(
        functools.partial(_ffn_residual_ln_kernel, eps=eps),
        out_shape=jax.ShapeDtypeStruct((m_pad, d_model), x2d.dtype),
        grid_spec=pltpu.PrefetchScalarGridSpec(
            num_scalar_prefetch=0,
            grid=(m_pad // tm, d_ff // t_ff),
            in_specs=[
                pl.BlockSpec((tm, d_model), lambda i, k: (i, 0)),
                pl.BlockSpec((d_model, t_ff), lambda i, k: (0, k)),
                pl.BlockSpec((1, t_ff), lambda i, k: (0, k)),
                pl.BlockSpec((t_ff, d_model), lambda i, k: (k, 0)),
                pl.BlockSpec((1, d_model), lambda i, k: (0, 0)),
                pl.BlockSpec((1, d_model), lambda i, k: (0, 0)),
                pl.BlockSpec((1, d_model), lambda i, k: (0, 0)),
            ],
            out_specs=pl.BlockSpec((tm, d_model), lambda i, k: (i, 0)),
            scratch_shapes=[pltpu.VMEM((tm, d_model), jnp.float32)],
        ),
        compiler_params=_compiler_params(("parallel", "arbitrary")),
    )(x2d, w1, b1, w2, b2, gamma, beta)


# --------------------------------------------------------------------------------------
# Full encoder-layer forward
# --------------------------------------------------------------------------------------
@functools.partial(jax.jit, static_argnames=("n_heads", "eps", "return_attn_weights"))
def transformer_encoder_layer(x, params, *, n_heads, eps=1e-5, return_attn_weights=True):
    """x: [batch, seq, d_model] -> (out [batch, seq, d_model], attn_weights [B, H, S, S])."""
    batch, seq, d_model = x.shape
    assert d_model % n_heads == 0
    m = batch * seq
    tm, m_pad = _pick_row_tile(m)

    x2d = x.reshape(m, d_model)
    x2d_p = jnp.pad(x2d, ((0, m_pad - m), (0, 0))) if m_pad != m else x2d

    # --- fused Q/K/V projection (weights pre-concatenated once in init_params) ---
    qkv2d = _linear(x2d_p, params["wqkv"], params["bqkv"], tm=tm)       # (m_pad, 3*d_model)
    qkv3d = (qkv2d if m_pad == m else qkv2d[:m]).reshape(batch, seq, 3 * d_model)

    # --- scaled dot-product attention, one batch per grid step, heads sliced in-kernel ---
    ctx, attn_w = _attention(qkv3d, n_heads=n_heads, return_weights=return_attn_weights)
    ctx2d = ctx.reshape(m, d_model)                                     # contiguous, copy-free
    ctx_p = jnp.pad(ctx2d, ((0, m_pad - m), (0, 0))) if m_pad != m else ctx2d

    # --- output projection + residual + LayerNorm (norm1), fused ---
    x1_p = _proj_residual_ln(ctx_p, params["wo"], params["bo"], x2d_p,
                             params["gamma1"], params["beta1"], tm=tm, eps=eps)

    # --- FFN (fc1 -> ReLU -> fc2) + residual + LayerNorm (norm2), fused ---
    x2_p = _ffn_residual_ln(x1_p, params["w1"], params["b1"], params["w2"], params["b2"],
                            params["gamma2"], params["beta2"], tm=tm, eps=eps)

    out = (x2_p if m_pad == m else x2_p[:m]).reshape(batch, seq, d_model)
    return out, attn_w


# --------------------------------------------------------------------------------------
# Parameter init (mirrors nn.Linear / nn.LayerNorm shapes; Linear weights stored transposed)
# --------------------------------------------------------------------------------------
def init_params(key, d_model, d_ff, dtype=jnp.float32):
    keys = jax.random.split(key, 12)

    def linear(kw, kb, fan_in, fan_out):
        lim = 1.0 / math.sqrt(fan_in)
        w = jax.random.uniform(kw, (fan_in, fan_out), dtype, -lim, lim)
        b = jax.random.uniform(kb, (1, fan_out), dtype, -lim, lim)
        return w, b

    wq, bq = linear(keys[0], keys[1], d_model, d_model)
    wk, bk = linear(keys[2], keys[3], d_model, d_model)
    wv, bv = linear(keys[4], keys[5], d_model, d_model)
    wo, bo = linear(keys[6], keys[7], d_model, d_model)
    w1, b1 = linear(keys[8], keys[9], d_model, d_ff)
    w2, b2 = linear(keys[10], keys[11], d_ff, d_model)
    ones = jnp.ones((1, d_model), dtype)
    zeros = jnp.zeros((1, d_model), dtype)
    return dict(
        wq=wq, bq=bq, wk=wk, bk=bk, wv=wv, bv=bv, wo=wo, bo=bo,
        # Pre-concatenated once here so the jitted forward does no per-call concat copies.
        wqkv=jnp.concatenate([wq, wk, wv], axis=1),
        bqkv=jnp.concatenate([bq, bk, bv], axis=1),
        w1=w1, b1=b1, w2=w2, b2=b2,
        gamma1=ones, beta1=zeros, gamma2=ones, beta2=zeros)


# --------------------------------------------------------------------------------------
# Pure-JAX reference (eval-mode) for correctness checking
# --------------------------------------------------------------------------------------
def reference_layer(x, p, n_heads, eps=1e-5):
    batch, seq, d_model = x.shape
    dk = d_model // n_heads

    def lin(t, w, b):
        return t @ w + b[0]

    def ln(t, g, b):
        mu = t.mean(-1, keepdims=True)
        var = ((t - mu) ** 2).mean(-1, keepdims=True)
        return (t - mu) / jnp.sqrt(var + eps) * g[0] + b[0]

    with jax.default_matmul_precision("float32"):
        q = lin(x, p["wq"], p["bq"]).reshape(batch, seq, n_heads, dk).transpose(0, 2, 1, 3)
        k = lin(x, p["wk"], p["bk"]).reshape(batch, seq, n_heads, dk).transpose(0, 2, 1, 3)
        v = lin(x, p["wv"], p["bv"]).reshape(batch, seq, n_heads, dk).transpose(0, 2, 1, 3)
        s = jnp.einsum("bhqd,bhkd->bhqk", q, k) / math.sqrt(dk)
        w = jax.nn.softmax(s, axis=-1)
        o = jnp.einsum("bhqk,bhkd->bhqd", w, v)
        o = o.transpose(0, 2, 1, 3).reshape(batch, seq, d_model)
        attn = lin(o, p["wo"], p["bo"])
        x1 = ln(x + attn, p["gamma1"], p["beta1"])
        ff = jnp.maximum(x1 @ p["w1"] + p["b1"][0], 0.0) @ p["w2"] + p["b2"][0]
        x2 = ln(x1 + ff, p["gamma2"], p["beta2"])
    return x2, w


if __name__ == "__main__":
    batch, seq, d_model, n_heads, d_ff = 2, 8, 32, 4, 64

    key = jax.random.PRNGKey(0)
    kx, kp = jax.random.split(key)
    x = jax.random.normal(kx, (batch, seq, d_model), jnp.float32)
    params = init_params(kp, d_model, d_ff)

    out, attn_w = transformer_encoder_layer(x, params, n_heads=n_heads)
    out = jax.block_until_ready(out)
    attn_w = jax.block_until_ready(attn_w)

    ref_out, ref_w = reference_layer(x, params, n_heads)

    assert out.shape == (batch, seq, d_model)
    assert attn_w.shape == (batch, n_heads, seq, seq)
    assert jnp.allclose(out, ref_out, atol=1e-4, rtol=1e-4), \
        f"max err {jnp.max(jnp.abs(out - ref_out))}"
    assert jnp.allclose(attn_w, ref_w, atol=1e-4, rtol=1e-4), \
        f"max err {jnp.max(jnp.abs(attn_w - ref_w))}"

    print("KERNEL_OK")
</pallas_src>

<mosaic_0001>
module attributes {stable_mosaic.version = 11 : i64} {
  func.func @_linear_kernel(%arg0: i32, %arg1: i32, %arg2: memref<8x32xf32, #tpu.memory_space<vmem>>, %arg3: memref<32x96xf32, #tpu.memory_space<vmem>>, %arg4: memref<1x96xf32, #tpu.memory_space<vmem>>, %arg5: memref<8x96xf32, #tpu.memory_space<vmem>>) attributes {dimension_semantics = [#tpu.dimension_semantics<parallel>, #tpu.dimension_semantics<parallel>], iteration_bounds = array<i64: 2, 1>, scalar_prefetch = 0 : i64, scratch_operands = 0 : i64, tpu.core_type = #tpu.core_type<tc>, window_params = [{transform_indices = @transform_0, window_bounds = array<i64: 8, 32>}, {transform_indices = @transform_1, window_bounds = array<i64: 32, 96>}, {transform_indices = @transform_2, window_bounds = array<i64: 1, 96>}, {transform_indices = @transform_3, window_bounds = array<i64: 8, 96>}]} {
    %c0 = arith.constant 0 : index
    %c0_0 = arith.constant 0 : index
    %0 = vector.load %arg2[%c0, %c0_0] : memref<8x32xf32, #tpu.memory_space<vmem>>, vector<8x32xf32>
    %c0_1 = arith.constant 0 : index
    %c0_2 = arith.constant 0 : index
    %1 = vector.load %arg3[%c0_1, %c0_2] : memref<32x96xf32, #tpu.memory_space<vmem>>, vector<32x96xf32>
    %cst = arith.constant dense<0.000000e+00> : vector<8x96xf32>
    %2 = tpu.matmul %0, %1, %cst {dimension_numbers = #tpu.dot_dimension_numbers<[1], [0], [0], [1], [0, 0, 1, 1], [], []>} : vector<8x32xf32>, vector<32x96xf32>, vector<8x96xf32> -> vector<8x96xf32>
    %c0_3 = arith.constant 0 : index
    %c0_4 = arith.constant 0 : index
    %3 = vector.load %arg4[%c0_3, %c0_4] : memref<1x96xf32, #tpu.memory_space<vmem>>, vector<1x96xf32>
    %4 = vector.broadcast %3 : vector<1x96xf32> to vector<8x96xf32>
    %5 = arith.addf %2, %4 : vector<8x96xf32>
    %c0_5 = arith.constant 0 : index
    %c0_6 = arith.constant 0 : index
    %6 = vector.load %arg5[%c0_5, %c0_6] : memref<8x96xf32, #tpu.memory_space<vmem>>, vector<8x96xf32>
    tpu.vector_store %arg5[%c0_5, %c0_6], %5 {strides = array<i32>} : memref<8x96xf32, #tpu.memory_space<vmem>>, vector<8x96xf32>,
    return
  }
  func.func @transform_0(%arg0: i32, %arg1: i32) -> (i32, i32) {
    %c0_i32 = arith.constant 0 : i32
    %c0_i32_0 = arith.constant 0 : i32
    return %arg0, %c0_i32 : i32, i32
  }
  func.func @transform_1(%arg0: i32, %arg1: i32) -> (i32, i32) {
    %c0_i32 = arith.constant 0 : i32
    %c0_i32_0 = arith.constant 0 : i32
    return %c0_i32, %arg1 : i32, i32
  }
  func.func @transform_2(%arg0: i32, %arg1: i32) -> (i32, i32) {
    %c0_i32 = arith.constant 0 : i32
    %c0_i32_0 = arith.constant 0 : i32
    return %c0_i32, %arg1 : i32, i32
  }
  func.func @transform_3(%arg0: i32, %arg1: i32) -> (i32, i32) {
    %c0_i32 = arith.constant 0 : i32
    return %arg0, %arg1 : i32, i32
  }
}

module attributes {stable_mosaic.version = 11 : i64} {
  func.func @_attn_kernel(%arg0: i32, %arg1: memref<1x8x96xf32, #tpu.memory_space<vmem>>, %arg2: memref<1x8x32xf32, #tpu.memory_space<vmem>>, %arg3: memref<1x4x8x8xf32, #tpu.memory_space<vmem>>) attributes {dimension_semantics = [#tpu.dimension_semantics<parallel>], iteration_bounds = array<i64: 2>, scalar_prefetch = 0 : i64, scratch_operands = 0 : i64, tpu.core_type = #tpu.core_type<tc>, window_params = [{transform_indices = @transform_0, window_bounds = array<i64: 1, 8, 96>}, {transform_indices = @transform_1, window_bounds = array<i64: 1, 8, 32>}, {transform_indices = @transform_2, window_bounds = array<i64: 1, 4, 8, 8>}]} {
    %c0 = arith.constant 0 : index
    %c0_0 = arith.constant 0 : index
    %c0_1 = arith.constant 0 : index
    %0 = vector.load %arg1[%c0, %c0_0, %c0_1] : memref<1x8x96xf32, #tpu.memory_space<vmem>>, vector<1x8x96xf32>
    %1 = vector.shape_cast %0 : vector<1x8x96xf32> to vector<8x96xf32>
    %2 = vector.extract_strided_slice %1 {offsets = [0, 0], sizes = [8, 8], strides = [1, 1]} : vector<8x96xf32> to vector<8x8xf32>
    %3 = vector.extract_strided_slice %1 {offsets = [0, 32], sizes = [8, 8], strides = [1, 1]} : vector<8x96xf32> to vector<8x8xf32>
    %4 = vector.extract_strided_slice %1 {offsets = [0, 64], sizes = [8, 8], strides = [1, 1]} : vector<8x96xf32> to vector<8x8xf32>
    %cst = arith.constant dense<0.000000e+00> : vector<8x8xf32>
    %5 = tpu.matmul %2, %3, %cst {dimension_numbers = #tpu.dot_dimension_numbers<[1], [1], [0], [0], [0, 0, 1, 0], [], []>} : vector<8x8xf32>, vector<8x8xf32>, vector<8x8xf32> -> vector<8x8xf32>
    %cst_2 = arith.constant 0.353553385 : f32
    %6 = vector.broadcast %cst_2 : f32 to vector<8x8xf32>
    %7 = arith.mulf %5, %6 : vector<8x8xf32>
    %cst_3 = arith.constant dense<0xFF800000> : vector<8xf32>
    %8 = vector.multi_reduction <maximumf>, %7, %cst_3 [1] : vector<8x8xf32> to vector<8xf32>
    %9 = vector.shape_cast %8 : vector<8xf32> to vector<8x1xf32>
    %10 = vector.broadcast %9 : vector<8x1xf32> to vector<8x8xf32>
    %11 = arith.subf %7, %10 : vector<8x8xf32>
    %12 = math.exp %11 : vector<8x8xf32>
    %cst_4 = arith.constant dense<0.000000e+00> : vector<8xf32>
    %13 = vector.multi_reduction <add>, %12, %cst_4 [1] : vector<8x8xf32> to vector<8xf32>
    %14 = vector.shape_cast %13 : vector<8xf32> to vector<8x1xf32>
    %15 = tpu.reciprocal %14 : vector<8x1xf32> -> vector<8x1xf32>
    %16 = vector.broadcast %15 : vector<8x1xf32> to vector<8x8xf32>
    %17 = arith.mulf %12, %16 : vector<8x8xf32>
    %c0_5 = arith.constant 0 : index
    %c0_6 = arith.constant 0 : index
    %c0_7 = arith.constant 0 : index
    %c0_8 = arith.constant 0 : index
    %18 = vector.load %arg3[%c0_5, %c0_6, %c0_7, %c0_8] : memref<1x4x8x8xf32, #tpu.memory_space<vmem>>, vector<1x1x8x8xf32>
    %19 = vector.shape_cast %18 : vector<1x1x8x8xf32> to vector<8x8xf32>
    %20 = vector.shape_cast %17 : vector<8x8xf32> to vector<1x1x8x8xf32>
    tpu.vector_store %arg3[%c0_5, %c0_6, %c0_7, %c0_8], %20 {strides = array<i32>} : memref<1x4x8x8xf32, #tpu.memory_space<vmem>>, vector<1x1x8x8xf32>,
    %cst_9 = arith.constant dense<0.000000e+00> : vector<8x8xf32>
    %21 = tpu.matmul %17, %4, %cst_9 {dimension_numbers = #tpu.dot_dimension_numbers<[1], [0], [0], [1], [0, 0, 1, 1], [], []>} : vector<8x8xf32>, vector<8x8xf32>, vector<8x8xf32> -> vector<8x8xf32>
    %22 = vector.extract_strided_slice %1 {offsets = [0, 8], sizes = [8, 8], strides = [1, 1]} : vector<8x96xf32> to vector<8x8xf32>
    %23 = vector.extract_strided_slice %1 {offsets = [0, 40], sizes = [8, 8], strides = [1, 1]} : vector<8x96xf32> to vector<8x8xf32>
    %24 = vector.extract_strided_slice %1 {offsets = [0, 72], sizes = [8, 8], strides = [1, 1]} : vector<8x96xf32> to vector<8x8xf32>
    %cst_10 = arith.constant dense<0.000000e+00> : vector<8x8xf32>
    %25 = tpu.matmul %22, %23, %cst_10 {dimension_numbers = #tpu.dot_dimension_numbers<[1], [1], [0], [0], [0, 0, 1, 0], [], []>} : vector<8x8xf32>, vector<8x8xf32>, vector<8x8xf32> -> vector<8x8xf32>
    %cst_11 = arith.constant 0.353553385 : f32
    %26 = vector.broadcast %cst_11 : f32 to vector<8x8xf32>
    %27 = arith.mulf %25, %26 : vector<8x8xf32>
    %cst_12 = arith.constant dense<0xFF800000> : vector<8xf32>
    %28 = vector.multi_reduction <maximumf>, %27, %cst_12 [1] : vector<8x8xf32> to vector<8xf32>
    %29 = vector.shape_cast %28 : vector<8xf32> to vector<8x1xf32>
    %30 = vector.broadcast %29 : vector<8x1xf32> to vector<8x8xf32>
    %31 = arith.subf %27, %30 : vector<8x8xf32>
    %32 = math.exp %31 : vector<8x8xf32>
    %cst_13 = arith.constant dense<0.000000e+00> : vector<8xf32>
    %33 = vector.multi_reduction <add>, %32, %cst_13 [1] : vector<8x8xf32> to vector<8xf32>
    %34 = vector.shape_cast %33 : vector<8xf32> to vector<8x1xf32>
    %35 = tpu.reciprocal %34 : vector<8x1xf32> -> vector<8x1xf32>
    %36 = vector.broadcast %35 : vector<8x1xf32> to vector<8x8xf32>
    %37 = arith.mulf %32, %36 : vector<8x8xf32>
    %c0_14 = arith.constant 0 : index
    %c1 = arith.constant 1 : index
    %c0_15 = arith.constant 0 : index
    %c0_16 = arith.constant 0 : index
    %38 = vector.load %arg3[%c0_14, %c1, %c0_15, %c0_16] : memref<1x4x8x8xf32, #tpu.memory_space<vmem>>, vector<1x1x8x8xf32>
    %39 = vector.shape_cast %38 : vector<1x1x8x8xf32> to vector<8x8xf32>
    %40 = vector.shape_cast %37 : vector<8x8xf32> to vector<1x1x8x8xf32>
    tpu.vector_store %arg3[%c0_14, %c1, %c0_15, %c0_16], %40 {strides = array<i32>} : memref<1x4x8x8xf32, #tpu.memory_space<vmem>>, vector<1x1x8x8xf32>,
    %cst_17 = arith.constant dense<0.000000e+00> : vector<8x8xf32>
    %41 = tpu.matmul %37, %24, %cst_17 {dimension_numbers = #tpu.dot_dimension_numbers<[1], [0], [0], [1], [0, 0, 1, 1], [], []>} : vector<8x8xf32>, vector<8x8xf32>, vector<8x8xf32> -> vector<8x8xf32>
    %42 = vector.extract_strided_slice %1 {offsets = [0, 16], sizes = [8, 8], strides = [1, 1]} : vector<8x96xf32> to vector<8x8xf32>
    %43 = vector.extract_strided_slice %1 {offsets = [0, 48], sizes = [8, 8], strides = [1, 1]} : vector<8x96xf32> to vector<8x8xf32>
    %44 = vector.extract_strided_slice %1 {offsets = [0, 80], sizes = [8, 8], strides = [1, 1]} : vector<8x96xf32> to vector<8x8xf32>
    %cst_18 = arith.constant dense<0.000000e+00> : vector<8x8xf32>
    %45 = tpu.matmul %42, %43, %cst_18 {dimension_numbers = #tpu.dot_dimension_numbers<[1], [1], [0], [0], [0, 0, 1, 0], [], []>} : vector<8x8xf32>, vector<8x8xf32>, vector<8x8xf32> -> vector<8x8xf32>
    %cst_19 = arith.constant 0.353553385 : f32
    %46 = vector.broadcast %cst_19 : f32 to vector<8x8xf32>
    %47 = arith.mulf %45, %46 : vector<8x8xf32>
    %cst_20 = arith.constant dense<0xFF800000> : vector<8xf32>
    %48 = vector.multi_reduction <maximumf>, %47, %cst_20 [1] : vector<8x8xf32> to vector<8xf32>
    %49 = vector.shape_cast %48 : vector<8xf32> to vector<8x1xf32>
    %50 = vector.broadcast %49 : vector<8x1xf32> to vector<8x8xf32>
    %51 = arith.subf %47, %50 : vector<8x8xf32>
    %52 = math.exp %51 : vector<8x8xf32>
    %cst_21 = arith.constant dense<0.000000e+00> : vector<8xf32>
    %53 = vector.multi_reduction <add>, %52, %cst_21 [1] : vector<8x8xf32> to vector<8xf32>
    %54 = vector.shape_cast %53 : vector<8xf32> to vector<8x1xf32>
    %55 = tpu.reciprocal %54 : vector<8x1xf32> -> vector<8x1xf32>
    %56 = vector.broadcast %55 : vector<8x1xf32> to vector<8x8xf32>
    %57 = arith.mulf %52, %56 : vector<8x8xf32>
    %c0_22 = arith.constant 0 : index
    %c2 = arith.constant 2 : index
    %c0_23 = arith.constant 0 : index
    %c0_24 = arith.constant 0 : index
    %58 = vector.load %arg3[%c0_22, %c2, %c0_23, %c0_24] : memref<1x4x8x8xf32, #tpu.memory_space<vmem>>, vector<1x1x8x8xf32>
    %59 = vector.shape_cast %58 : vector<1x1x8x8xf32> to vector<8x8xf32>
    %60 = vector.shape_cast %57 : vector<8x8xf32> to vector<1x1x8x8xf32>
    tpu.vector_store %arg3[%c0_22, %c2, %c0_23, %c0_24], %60 {strides = array<i32>} : memref<1x4x8x8xf32, #tpu.memory_space<vmem>>, vector<1x1x8x8xf32>,
    %cst_25 = arith.constant dense<0.000000e+00> : vector<8x8xf32>
    %61 = tpu.matmul %57, %44, %cst_25 {dimension_numbers = #tpu.dot_dimension_numbers<[1], [0], [0], [1], [0, 0, 1, 1], [], []>} : vector<8x8xf32>, vector<8x8xf32>, vector<8x8xf32> -> vector<8x8xf32>
    %62 = vector.extract_strided_slice %1 {offsets = [0, 24], sizes = [8, 8], strides = [1, 1]} : vector<8x96xf32> to vector<8x8xf32>
    %63 = vector.extract_strided_slice %1 {offsets = [0, 56], sizes = [8, 8], strides = [1, 1]} : vector<8x96xf32> to vector<8x8xf32>
    %64 = vector.extract_strided_slice %1 {offsets = [0, 88], sizes = [8, 8], strides = [1, 1]} : vector<8x96xf32> to vector<8x8xf32>
    %cst_26 = arith.constant dense<0.000000e+00> : vector<8x8xf32>
    %65 = tpu.matmul %62, %63, %cst_26 {dimension_numbers = #tpu.dot_dimension_numbers<[1], [1], [0], [0], [0, 0, 1, 0], [], []>} : vector<8x8xf32>, vector<8x8xf32>, vector<8x8xf32> -> vector<8x8xf32>
    %cst_27 = arith.constant 0.353553385 : f32
    %66 = vector.broadcast %cst_27 : f32 to vector<8x8xf32>
    %67 = arith.mulf %65, %66 : vector<8x8xf32>
    %cst_28 = arith.constant dense<0xFF800000> : vector<8xf32>
    %68 = vector.multi_reduction <maximumf>, %67, %cst_28 [1] : vector<8x8xf32> to vector<8xf32>
    %69 = vector.shape_cast %68 : vector<8xf32> to vector<8x1xf32>
    %70 = vector.broadcast %69 : vector<8x1xf32> to vector<8x8xf32>
    %71 = arith.subf %67, %70 : vector<8x8xf32>
    %72 = math.exp %71 : vector<8x8xf32>
    %cst_29 = arith.constant dense<0.000000e+00> : vector<8xf32>
    %73 = vector.multi_reduction <add>, %72, %cst_29 [1] : vector<8x8xf32> to vector<8xf32>
    %74 = vector.shape_cast %73 : vector<8xf32> to vector<8x1xf32>
    %75 = tpu.reciprocal %74 : vector<8x1xf32> -> vector<8x1xf32>
    %76 = vector.broadcast %75 : vector<8x1xf32> to vector<8x8xf32>
    %77 = arith.mulf %72, %76 : vector<8x8xf32>
    %c0_30 = arith.constant 0 : index
    %c3 = arith.constant 3 : index
    %c0_31 = arith.constant 0 : index
    %c0_32 = arith.constant 0 : index
    %78 = vector.load %arg3[%c0_30, %c3, %c0_31, %c0_32] : memref<1x4x8x8xf32, #tpu.memory_space<vmem>>, vector<1x1x8x8xf32>
    %79 = vector.shape_cast %78 : vector<1x1x8x8xf32> to vector<8x8xf32>
    %80 = vector.shape_cast %77 : vector<8x8xf32> to vector<1x1x8x8xf32>
    tpu.vector_store %arg3[%c0_30, %c3, %c0_31, %c0_32], %80 {strides = array<i32>} : memref<1x4x8x8xf32, #tpu.memory_space<vmem>>, vector<1x1x8x8xf32>,
    %cst_33 = arith.constant dense<0.000000e+00> : vector<8x8xf32>
    %81 = tpu.matmul %77, %64, %cst_33 {dimension_numbers = #tpu.dot_dimension_numbers<[1], [0], [0], [1], [0, 0, 1, 1], [], []>} : vector<8x8xf32>, vector<8x8xf32>, vector<8x8xf32> -> vector<8x8xf32>
    %82 = tpu.concatenate %21, %41, %61, %81 in 1 : vector<8x8xf32>, vector<8x8xf32>, vector<8x8xf32>, vector<8x8xf32> -> vector<8x32xf32>
    %c0_34 = arith.constant 0 : index
    %c0_35 = arith.constant 0 : index
    %c0_36 = arith.constant 0 : index
    %83 = vector.load %arg2[%c0_34, %c0_35, %c0_36] : memref<1x8x32xf32, #tpu.memory_space<vmem>>, vector<1x8x32xf32>
    %84 = vector.shape_cast %83 : vector<1x8x32xf32> to vector<8x32xf32>
    %85 = vector.shape_cast %82 : vector<8x32xf32> to vector<1x8x32xf32>
    tpu.vector_store %arg2[%c0_34, %c0_35, %c0_36], %85 {strides = array<i32>} : memref<1x8x32xf32, #tpu.memory_space<vmem>>, vector<1x8x32xf32>,
    return
  }
  func.func @transform_0(%arg0: i32) -> (i32, i32, i32) {
    %c0_i32 = arith.constant 0 : i32
    %c0_i32_0 = arith.constant 0 : i32
    %c0_i32_1 = arith.constant 0 : i32
    return %arg0, %c0_i32, %c0_i32_0 : i32, i32, i32
  }
  func.func @transform_1(%arg0: i32) -> (i32, i32, i32) {
    %c0_i32 = arith.constant 0 : i32
    %c0_i32_0 = arith.constant 0 : i32
    %c0_i32_1 = arith.constant 0 : i32
    return %arg0, %c0_i32, %c0_i32_0 : i32, i32, i32
  }
  func.func @transform_2(%arg0: i32) -> (i32, i32, i32, i32) {
    %c0_i32 = arith.constant 0 : i32
    %c0_i32_0 = arith.constant 0 : i32
    %c0_i32_1 = arith.constant 0 : i32
    %c0_i32_2 = arith.constant 0 : i32
    return %arg0, %c0_i32, %c0_i32_0, %c0_i32_1 : i32, i32, i32, i32
  }
}

module attributes {stable_mosaic.version = 11 : i64} {
  func.func @_proj_residual_ln_kernel(%arg0: i32, %arg1: memref<8x32xf32, #tpu.memory_space<vmem>>, %arg2: memref<32x32xf32, #tpu.memory_space<vmem>>, %arg3: memref<1x32xf32, #tpu.memory_space<vmem>>, %arg4: memref<8x32xf32, #tpu.memory_space<vmem>>, %arg5: memref<1x32xf32, #tpu.memory_space<vmem>>, %arg6: memref<1x32xf32, #tpu.memory_space<vmem>>, %arg7: memref<8x32xf32, #tpu.memory_space<vmem>>) attributes {dimension_semantics = [#tpu.dimension_semantics<parallel>], iteration_bounds = array<i64: 2>, scalar_prefetch = 0 : i64, scratch_operands = 0 : i64, tpu.core_type = #tpu.core_type<tc>, window_params = [{transform_indices = @transform_0, window_bounds = array<i64: 8, 32>}, {pipeline_mode = #tpu.pipeline_mode<synchronous>, transform_indices = @transform_1, window_bounds = array<i64: 32, 32>}, {pipeline_mode = #tpu.pipeline_mode<synchronous>, transform_indices = @transform_2, window_bounds = array<i64: 1, 32>}, {transform_indices = @transform_3, window_bounds = array<i64: 8, 32>}, {pipeline_mode = #tpu.pipeline_mode<synchronous>, transform_indices = @transform_4, window_bounds = array<i64: 1, 32>}, {pipeline_mode = #tpu.pipeline_mode<synchronous>, transform_indices = @transform_5, window_bounds = array<i64: 1, 32>}, {transform_indices = @transform_6, window_bounds = array<i64: 8, 32>}]} {
    %c0 = arith.constant 0 : index
    %c0_0 = arith.constant 0 : index
    %0 = vector.load %arg1[%c0, %c0_0] : memref<8x32xf32, #tpu.memory_space<vmem>>, vector<8x32xf32>
    %c0_1 = arith.constant 0 : index
    %c0_2 = arith.constant 0 : index
    %1 = vector.load %arg2[%c0_1, %c0_2] : memref<32x32xf32, #tpu.memory_space<vmem>>, vector<32x32xf32>
    %cst = arith.constant dense<0.000000e+00> : vector<8x32xf32>
    %2 = tpu.matmul %0, %1, %cst {dimension_numbers = #tpu.dot_dimension_numbers<[1], [0], [0], [1], [0, 0, 1, 1], [], []>} : vector<8x32xf32>, vector<32x32xf32>, vector<8x32xf32> -> vector<8x32xf32>
    %c0_3 = arith.constant 0 : index
    %c0_4 = arith.constant 0 : index
    %3 = vector.load %arg3[%c0_3, %c0_4] : memref<1x32xf32, #tpu.memory_space<vmem>>, vector<1x32xf32>
    %4 = vector.broadcast %3 : vector<1x32xf32> to vector<8x32xf32>
    %5 = arith.addf %2, %4 : vector<8x32xf32>
    %c0_5 = arith.constant 0 : index
    %c0_6 = arith.constant 0 : index
    %6 = vector.load %arg4[%c0_5, %c0_6] : memref<8x32xf32, #tpu.memory_space<vmem>>, vector<8x32xf32>
    %7 = arith.addf %5, %6 : vector<8x32xf32>
    %cst_7 = arith.constant dense<0.000000e+00> : vector<8xf32>
    %8 = vector.multi_reduction <add>, %7, %cst_7 [1] : vector<8x32xf32> to vector<8xf32>
    %9 = vector.shape_cast %8 : vector<8xf32> to vector<8x1xf32>
    %cst_8 = arith.constant 3.200000e+01 : f32
    %10 = vector.broadcast %cst_8 : f32 to vector<8x1xf32>
    %11 = arith.divf %9, %10 : vector<8x1xf32>
    %12 = vector.broadcast %11 : vector<8x1xf32> to vector<8x32xf32>
    %13 = arith.subf %7, %12 : vector<8x32xf32>
    %14 = arith.mulf %13, %13 : vector<8x32xf32>
    %cst_9 = arith.constant dense<0.000000e+00> : vector<8xf32>
    %15 = vector.multi_reduction <add>, %14, %cst_9 [1] : vector<8x32xf32> to vector<8xf32>
    %16 = vector.shape_cast %15 : vector<8xf32> to vector<8x1xf32>
    %cst_10 = arith.constant 3.200000e+01 : f32
    %17 = vector.broadcast %cst_10 : f32 to vector<8x1xf32>
    %18 = arith.divf %16, %17 : vector<8x1xf32>
    %19 = vector.broadcast %11 : vector<8x1xf32> to vector<8x32xf32>
    %20 = arith.subf %7, %19 : vector<8x32xf32>
    %cst_11 = arith.constant 9.99999974E-6 : f32
    %21 = vector.broadcast %cst_11 : f32 to vector<8x1xf32>
    %22 = arith.addf %18, %21 : vector<8x1xf32>
    %23 = math.rsqrt %22 : vector<8x1xf32>
    %24 = vector.broadcast %23 : vector<8x1xf32> to vector<8x32xf32>
    %25 = arith.mulf %20, %24 : vector<8x32xf32>
    %c0_12 = arith.constant 0 : index
    %c0_13 = arith.constant 0 : index
    %26 = vector.load %arg5[%c0_12, %c0_13] : memref<1x32xf32, #tpu.memory_space<vmem>>, vector<1x32xf32>
    %27 = vector.broadcast %26 : vector<1x32xf32> to vector<8x32xf32>
    %28 = arith.mulf %25, %27 : vector<8x32xf32>
    %c0_14 = arith.constant 0 : index
    %c0_15 = arith.constant 0 : index
    %29 = vector.load %arg6[%c0_14, %c0_15] : memref<1x32xf32, #tpu.memory_space<vmem>>, vector<1x32xf32>
    %30 = vector.broadcast %29 : vector<1x32xf32> to vector<8x32xf32>
    %31 = arith.addf %28, %30 : vector<8x32xf32>
    %c0_16 = arith.constant 0 : index
    %c0_17 = arith.constant 0 : index
    %32 = vector.load %arg7[%c0_16, %c0_17] : memref<8x32xf32, #tpu.memory_space<vmem>>, vector<8x32xf32>
    tpu.vector_store %arg7[%c0_16, %c0_17], %31 {strides = array<i32>} : memref<8x32xf32, #tpu.memory_space<vmem>>, vector<8x32xf32>,
    return
  }
  func.func @transform_0(%arg0: i32) -> (i32, i32) {
    %c0_i32 = arith.constant 0 : i32
    %c0_i32_0 = arith.constant 0 : i32
    return %arg0, %c0_i32 : i32, i32
  }
  func.func @transform_1(%arg0: i32) -> (i32, i32) {
    %c0_i32 = arith.constant 0 : i32
    %c0_i32_0 = arith.constant 0 : i32
    %c0_i32_1 = arith.constant 0 : i32
    return %c0_i32, %c0_i32_0 : i32, i32
  }
  func.func @transform_2(%arg0: i32) -> (i32, i32) {
    %c0_i32 = arith.constant 0 : i32
    %c0_i32_0 = arith.constant 0 : i32
    %c0_i32_1 = arith.constant 0 : i32
    return %c0_i32, %c0_i32_0 : i32, i32
  }
  func.func @transform_3(%arg0: i32) -> (i32, i32) {
    %c0_i32 = arith.constant 0 : i32
    %c0_i32_0 = arith.constant 0 : i32
    return %arg0, %c0_i32 : i32, i32
  }
  func.func @transform_4(%arg0: i32) -> (i32, i32) {
    %c0_i32 = arith.constant 0 : i32
    %c0_i32_0 = arith.constant 0 : i32
    %c0_i32_1 = arith.constant 0 : i32
    return %c0_i32, %c0_i32_0 : i32, i32
  }
  func.func @transform_5(%arg0: i32) -> (i32, i32) {
    %c0_i32 = arith.constant 0 : i32
    %c0_i32_0 = arith.constant 0 : i32
    %c0_i32_1 = arith.constant 0 : i32
    return %c0_i32, %c0_i32_0 : i32, i32
  }
  func.func @transform_6(%arg0: i32) -> (i32, i32) {
    %c0_i32 = arith.constant 0 : i32
    %c0_i32_0 = arith.constant 0 : i32
    return %arg0, %c0_i32 : i32, i32
  }
}

module attributes {stable_mosaic.version = 11 : i64} {
  func.func @_ffn_residual_ln_kernel(%arg0: i32, %arg1: i32, %arg2: memref<8x32xf32, #tpu.memory_space<vmem>>, %arg3: memref<32x64xf32, #tpu.memory_space<vmem>>, %arg4: memref<1x64xf32, #tpu.memory_space<vmem>>, %arg5: memref<64x32xf32, #tpu.memory_space<vmem>>, %arg6: memref<1x32xf32, #tpu.memory_space<vmem>>, %arg7: memref<1x32xf32, #tpu.memory_space<vmem>>, %arg8: memref<1x32xf32, #tpu.memory_space<vmem>>, %arg9: memref<8x32xf32, #tpu.memory_space<vmem>>, %arg10: memref<8x32xf32, #tpu.memory_space<vmem>>) attributes {dimension_semantics = [#tpu.dimension_semantics<parallel>, #tpu.dimension_semantics<arbitrary>], iteration_bounds = array<i64: 2, 1>, scalar_prefetch = 0 : i64, scratch_operands = 1 : i64, tpu.core_type = #tpu.core_type<tc>, window_params = [{transform_indices = @transform_0, window_bounds = array<i64: 8, 32>}, {transform_indices = @transform_1, window_bounds = array<i64: 32, 64>}, {transform_indices = @transform_2, window_bounds = array<i64: 1, 64>}, {transform_indices = @transform_3, window_bounds = array<i64: 64, 32>}, {pipeline_mode = #tpu.pipeline_mode<synchronous>, transform_indices = @transform_4, window_bounds = array<i64: 1, 32>}, {pipeline_mode = #tpu.pipeline_mode<synchronous>, transform_indices = @transform_5, window_bounds = array<i64: 1, 32>}, {pipeline_mode = #tpu.pipeline_mode<synchronous>, transform_indices = @transform_6, window_bounds = array<i64: 1, 32>}, {transform_indices = @transform_7, window_bounds = array<i64: 8, 32>}]} {
    %c0_i32 = arith.constant 0 : i32
    %0 = arith.cmpi eq, %arg1, %c0_i32 : i32
    %1 = arith.extui %0 : i1 to i32
    %c0_i32_0 = arith.constant 0 : i32
    %2 = arith.cmpi ne, %1, %c0_i32_0 : i32
    scf.if %2 {
      %c0_16 = arith.constant 0 : index
      %c0_17 = arith.constant 0 : index
      %19 = vector.load %arg6[%c0_16, %c0_17] : memref<1x32xf32, #tpu.memory_space<vmem>>, vector<1x32xf32>
      %20 = vector.shape_cast %19 : vector<1x32xf32> to vector<1x32xf32>
      %21 = vector.broadcast %20 : vector<1x32xf32> to vector<8x32xf32>
      %c0_18 = arith.constant 0 : index
      %c0_19 = arith.constant 0 : index
      %22 = vector.load %arg10[%c0_18, %c0_19] : memref<8x32xf32, #tpu.memory_space<vmem>>, vector<8x32xf32>
      tpu.vector_store %arg10[%c0_18, %c0_19], %21 {strides = array<i32>} : memref<8x32xf32, #tpu.memory_space<vmem>>, vector<8x32xf32>,
    } else {
    }
    %c0 = arith.constant 0 : index
    %c0_1 = arith.constant 0 : index
    %3 = vector.load %arg2[%c0, %c0_1] : memref<8x32xf32, #tpu.memory_space<vmem>>, vector<8x32xf32>
    %c0_2 = arith.constant 0 : index
    %c0_3 = arith.constant 0 : index
    %4 = vector.load %arg3[%c0_2, %c0_3] : memref<32x64xf32, #tpu.memory_space<vmem>>, vector<32x64xf32>
    %cst = arith.constant dense<0.000000e+00> : vector<8x64xf32>
    %5 = tpu.matmul %3, %4, %cst {dimension_numbers = #tpu.dot_dimension_numbers<[1], [0], [0], [1], [0, 0, 1, 1], [], []>} : vector<8x32xf32>, vector<32x64xf32>, vector<8x64xf32> -> vector<8x64xf32>
    %c0_4 = arith.constant 0 : index
    %c0_5 = arith.constant 0 : index
    %6 = vector.load %arg4[%c0_4, %c0_5] : memref<1x64xf32, #tpu.memory_space<vmem>>, vector<1x64xf32>
    %7 = vector.broadcast %6 : vector<1x64xf32> to vector<8x64xf32>
    %8 = arith.addf %5, %7 : vector<8x64xf32>
    %cst_6 = arith.constant 0.000000e+00 : f32
    %9 = vector.broadcast %cst_6 : f32 to vector<8x64xf32>
    %10 = arith.maximumf %8, %9 : vector<8x64xf32>
    %c0_7 = arith.constant 0 : index
    %c0_8 = arith.constant 0 : index
    %11 = vector.load %arg10[%c0_7, %c0_8] : memref<8x32xf32, #tpu.memory_space<vmem>>, vector<8x32xf32>
    %c0_9 = arith.constant 0 : index
    %c0_10 = arith.constant 0 : index
    %12 = vector.load %arg5[%c0_9, %c0_10] : memref<64x32xf32, #tpu.memory_space<vmem>>, vector<64x32xf32>
    %cst_11 = arith.constant dense<0.000000e+00> : vector<8x32xf32>
    %13 = tpu.matmul %10, %12, %cst_11 {dimension_numbers = #tpu.dot_dimension_numbers<[1], [0], [0], [1], [0, 0, 1, 1], [], []>} : vector<8x64xf32>, vector<64x32xf32>, vector<8x32xf32> -> vector<8x32xf32>
    %14 = arith.addf %11, %13 : vector<8x32xf32>
    %c0_12 = arith.constant 0 : index
    %c0_13 = arith.constant 0 : index
    %15 = vector.load %arg10[%c0_12, %c0_13] : memref<8x32xf32, #tpu.memory_space<vmem>>, vector<8x32xf32>
    tpu.vector_store %arg10[%c0_12, %c0_13], %14 {strides = array<i32>} : memref<8x32xf32, #tpu.memory_space<vmem>>, vector<8x32xf32>,
    %c0_i32_14 = arith.constant 0 : i32
    %16 = arith.cmpi eq, %arg1, %c0_i32_14 : i32
    %17 = arith.extui %16 : i1 to i32
    %c0_i32_15 = arith.constant 0 : i32
    %18 = arith.cmpi ne, %17, %c0_i32_15 : i32
    scf.if %18 {
      %c0_16 = arith.constant 0 : index
      %c0_17 = arith.constant 0 : index
      %19 = vector.load %arg10[%c0_16, %c0_17] : memref<8x32xf32, #tpu.memory_space<vmem>>, vector<8x32xf32>
      %c0_18 = arith.constant 0 : index
      %c0_19 = arith.constant 0 : index
      %20 = vector.load %arg2[%c0_18, %c0_19] : memref<8x32xf32, #tpu.memory_space<vmem>>, vector<8x32xf32>
      %21 = arith.addf %19, %20 : vector<8x32xf32>
      %cst_20 = arith.constant dense<0.000000e+00> : vector<8xf32>
      %22 = vector.multi_reduction <add>, %21, %cst_20 [1] : vector<8x32xf32> to vector<8xf32>
      %23 = vector.shape_cast %22 : vector<8xf32> to vector<8x1xf32>
      %cst_21 = arith.constant 3.200000e+01 : f32
      %24 = vector.broadcast %cst_21 : f32 to vector<8x1xf32>
      %25 = arith.divf %23, %24 : vector<8x1xf32>
      %26 = vector.broadcast %25 : vector<8x1xf32> to vector<8x32xf32>
      %27 = arith.subf %21, %26 : vector<8x32xf32>
      %28 = arith.mulf %27, %27 : vector<8x32xf32>
      %cst_22 = arith.constant dense<0.000000e+00> : vector<8xf32>
      %29 = vector.multi_reduction <add>, %28, %cst_22 [1] : vector<8x32xf32> to vector<8xf32>
      %30 = vector.shape_cast %29 : vector<8xf32> to vector<8x1xf32>
      %cst_23 = arith.constant 3.200000e+01 : f32
      %31 = vector.broadcast %cst_23 : f32 to vector<8x1xf32>
      %32 = arith.divf %30, %31 : vector<8x1xf32>
      %33 = vector.broadcast %25 : vector<8x1xf32> to vector<8x32xf32>
      %34 = arith.subf %21, %33 : vector<8x32xf32>
      %cst_24 = arith.constant 9.99999974E-6 : f32
      %35 = vector.broadcast %cst_24 : f32 to vector<8x1xf32>
      %36 = arith.addf %32, %35 : vector<8x1xf32>
      %37 = math.rsqrt %36 : vector<8x1xf32>
      %38 = vector.broadcast %37 : vector<8x1xf32> to vector<8x32xf32>
      %39 = arith.mulf %34, %38 : vector<8x32xf32>
      %c0_25 = arith.constant 0 : index
      %c0_26 = arith.constant 0 : index
      %40 = vector.load %arg7[%c0_25, %c0_26] : memref<1x32xf32, #tpu.memory_space<vmem>>, vector<1x32xf32>
      %41 = vector.broadcast %40 : vector<1x32xf32> to vector<8x32xf32>
      %42 = arith.mulf %39, %41 : vector<8x32xf32>
      %c0_27 = arith.constant 0 : index
      %c0_28 = arith.constant 0 : index
      %43 = vector.load %arg8[%c0_27, %c0_28] : memref<1x32xf32, #tpu.memory_space<vmem>>, vector<1x32xf32>
      %44 = vector.broadcast %43 : vector<1x32xf32> to vector<8x32xf32>
      %45 = arith.addf %42, %44 : vector<8x32xf32>
      %c0_29 = arith.constant 0 : index
      %c0_30 = arith.constant 0 : index
      %46 = vector.load %arg9[%c0_29, %c0_30] : memref<8x32xf32, #tpu.memory_space<vmem>>, vector<8x32xf32>
      tpu.vector_store %arg9[%c0_29, %c0_30], %45 {strides = array<i32>} : memref<8x32xf32, #tpu.memory_space<vmem>>, vector<8x32xf32>,
    } else {
    }
    return
  }
  func.func @transform_0(%arg0: i32, %arg1: i32) -> (i32, i32) {
    %c0_i32 = arith.constant 0 : i32
    %c0_i32_0 = arith.constant 0 : i32
    return %arg0, %c0_i32 : i32, i32
  }
  func.func @transform_1(%arg0: i32, %arg1: i32) -> (i32, i32) {
    %c0_i32 = arith.constant 0 : i32
    %c0_i32_0 = arith.constant 0 : i32
    return %c0_i32, %arg1 : i32, i32
  }
  func.func @transform_2(%arg0: i32, %arg1: i32) -> (i32, i32) {
    %c0_i32 = arith.constant 0 : i32
    %c0_i32_0 = arith.constant 0 : i32
    return %c0_i32, %arg1 : i32, i32
  }
  func.func @transform_3(%arg0: i32, %arg1: i32) -> (i32, i32) {
    %c0_i32 = arith.constant 0 : i32
    %c0_i32_0 = arith.constant 0 : i32
    return %arg1, %c0_i32 : i32, i32
  }
  func.func @transform_4(%arg0: i32, %arg1: i32) -> (i32, i32) {
    %c0_i32 = arith.constant 0 : i32
    %c0_i32_0 = arith.constant 0 : i32
    %c0_i32_1 = arith.constant 0 : i32
    return %c0_i32, %c0_i32_0 : i32, i32
  }
  func.func @transform_5(%arg0: i32, %arg1: i32) -> (i32, i32) {
    %c0_i32 = arith.constant 0 : i32
    %c0_i32_0 = arith.constant 0 : i32
    %c0_i32_1 = arith.constant 0 : i32
    return %c0_i32, %c0_i32_0 : i32, i32
  }
  func.func @transform_6(%arg0: i32, %arg1: i32) -> (i32, i32) {
    %c0_i32 = arith.constant 0 : i32
    %c0_i32_0 = arith.constant 0 : i32
    %c0_i32_1 = arith.constant 0 : i32
    return %c0_i32, %c0_i32_0 : i32, i32
  }
  func.func @transform_7(%arg0: i32, %arg1: i32) -> (i32, i32) {
    %c0_i32 = arith.constant 0 : i32
    %c0_i32_0 = arith.constant 0 : i32
    return %arg0, %c0_i32 : i32, i32
  }
}

</mosaic_0001>

<llo_original>
// kernel: transformer_encoder_layer.4
$region0: #{transformer_encoder_layer.4}
  #allocation0 [shape = 'u32[]', space=smem, size = 0x4, offset = 0x4, fixed_abs, tag = 'smem constant byte address 0x4 - core index']
  #allocation1 [shape = 'u32[144,128]{1,0:T(1,128)}', space=vmem, size = 0x12000, scoped, tag = 'internal scratch']
  %s0 = inlined_call_operand.hbm [shape: f32[16,32], index: 0, kind: input, shape index: {}]
  %s1 = inlined_call_operand.vmem [shape: f32[32,96], index: 1, kind: input, shape index: {}]
  %s2 = inlined_call_operand.vmem [shape: f32[1,96], index: 2, kind: input, shape index: {}]
  %s3 = inlined_call_operand.vmem [shape: f32[16,96], index: 3, kind: output, shape index: {}]
  %s4 = sld [smem:[#allocation0]]
  $region49: #{transformer_encoder_layer.4} parent=0
    _
  %s6 = ssub.s32 1, %s4
  %s7 = scalar_select 0, %s6, %s4
  $region1: #{transformer_encoder_layer.4} parent=0
    #allocation2 [shape = 'u8[8192]{0}', space=vmem, size = 0x2000, scoped, tag = 'input window, operand 0']
    #allocation3 [shape = 's32[2]{0}', space=sflag, size = 0x8, scoped, tag = 'scoped memory for transformer_encoder_layer.4']
    %8 = vsyncpa [#allocation3], 0
    %s9 = scalar_lea.sflag [#allocation3], 1
    %10 = vsyncpa %s9, 0
    loop: start=0, step=1, limit=4
    $region2: #{transformer_encoder_layer.4} parent=1 // loop_pre_header
      _
    $region3: #{transformer_encoder_layer.4} parent=1 // loop_header
      %s12 = sphi 0, %s16
      %p13 = scmp.ge.s32.totalorder %s12, 4
      %s19 = sphi 0, %s31
      %s20 = sphi 0, %s27
      %s21 = sphi 0, %s19
      %s22 = sphi 0, %s20
      %s23 = sphi 0, %s21
      %s24 = sphi 0, %s22
      %s34 = sphi 0, %s36
      %s37 = sphi 0, %s34
      %s38 = sphi 0, %s37
      %s54 = sphi 0, %s38
      %s60 = sphi 0, %s62
      %s63 = sphi 0, %s60
      %s64 = sphi 0, %s63
      %s80 = sphi 0, %s64
      %s86 = sphi 0, %s88
      %s89 = sphi 0, %s86
      %s90 = sphi 0, %s89
      %s106 = sphi 0, %s90
      %s114 = sphi 0, %s116
      %s117 = sphi 0, %s114
      %s118 = sphi 0, %s117
      %s134 = sphi 0, %s118
    $region4: #{transformer_encoder_layer.4} parent=1 // loop_header_branch
      %15 = sbr.rel (%p13) target = $region8
    $region5: #{transformer_encoder_layer.4} parent=1 // loop_body
      %s17 = ssub.s32 %s12, 1
      %s18 = ssub.s32 %s12, 2
      %s25 = sadd.s32 1, %s20
      %p26 = scmp.ge.s32.totalorder %s25, 1
      %s27 = scalar_select %p26, 0, %s25
      %s28 = sadd.s32 1, %s19
      %s29 = scalar_select %p26, %s28, %s19
      %p30 = scmp.ge.s32.totalorder %s29, 2
      %s31 = scalar_select %p30, 0, %s29
      %s32 = ssub.s32 %s19, %s31
      %p33 = scmp.eq.s32.totalorder %s32, 0
      %s35 = sadd.s32 %s34, 1
      %s36 = scalar_select %p33, %s34, %s35
      %p39 = pneg %p33
      %p40 = scmp.eq.s32.totalorder %s12, 1
      %p41 = por %p39, %p40
      %p42 = scmp.ne.s32.totalorder %s34, %s37
      %p43 = scmp.eq.s32.totalorder %s12, 0
      %p44 = por %p42, %p43
      %p45 = scmp.ne.s32.totalorder %s34, %s37
      %p46 = scmp.eq.s32.totalorder %s17, 1
      %p47 = por %p45, %p46
      %p48 = scmp.ne.s32.totalorder %s37, %s38
      %p49 = scmp.eq.s32.totalorder %s17, 0
      %p50 = por %p48, %p49
      %p51 = scmp.ne.s32.totalorder %s37, %s38
      %p52 = scmp.eq.s32.totalorder %s18, 1
      %p53 = por %p51, %p52
      %p55 = scmp.ne.s32.totalorder %s38, %s54
      %p56 = scmp.eq.s32.totalorder %s18, 0
      %p57 = por %p55, %p56
      %s58 = ssub.s32 %s20, %s27
      %p59 = scmp.eq.s32.totalorder %s58, 0
      %s61 = sadd.s32 %s60, 1
      %s62 = scalar_select %p59, %s60, %s61
      %p65 = pneg %p59
      %p66 = scmp.eq.s32.totalorder %s12, 1
      %p67 = por %p65, %p66
      %p68 = scmp.ne.s32.totalorder %s60, %s63
      %p69 = scmp.eq.s32.totalorder %s12, 0
      %p70 = por %p68, %p69
      %p71 = scmp.ne.s32.totalorder %s60, %s63
      %p72 = scmp.eq.s32.totalorder %s17, 1
      %p73 = por %p71, %p72
      %p74 = scmp.ne.s32.totalorder %s63, %s64
      %p75 = scmp.eq.s32.totalorder %s17, 0
      %p76 = por %p74, %p75
      %p77 = scmp.ne.s32.totalorder %s63, %s64
      %p78 = scmp.eq.s32.totalorder %s18, 1
      %p79 = por %p77, %p78
      %p81 = scmp.ne.s32.totalorder %s64, %s80
      %p82 = scmp.eq.s32.totalorder %s18, 0
      %p83 = por %p81, %p82
      %s84 = ssub.s32 %s20, %s27
      %p85 = scmp.eq.s32.totalorder %s84, 0
      %s87 = sadd.s32 %s86, 1
      %s88 = scalar_select %p85, %s86, %s87
      %p91 = pneg %p85
      %p92 = scmp.eq.s32.totalorder %s12, 1
      %p93 = por %p91, %p92
      %p94 = scmp.ne.s32.totalorder %s86, %s89
      %p95 = scmp.eq.s32.totalorder %s12, 0
      %p96 = por %p94, %p95
      %p97 = scmp.ne.s32.totalorder %s86, %s89
      %p98 = scmp.eq.s32.totalorder %s17, 1
      %p99 = por %p97, %p98
      %p100 = scmp.ne.s32.totalorder %s89, %s90
      %p101 = scmp.eq.s32.totalorder %s17, 0
      %p102 = por %p100, %p101
      %p103 = scmp.ne.s32.totalorder %s89, %s90
      %p104 = scmp.eq.s32.totalorder %s18, 1
      %p105 = por %p103, %p104
      %p107 = scmp.ne.s32.totalorder %s90, %s106
      %p108 = scmp.eq.s32.totalorder %s18, 0
      %p109 = por %p107, %p108
      %s110 = ssub.s32 %s19, %s31
      %s111 = ssub.s32 %s20, %s27
      %s112 = sor.u32 %s110, %s111
      %p113 = scmp.eq.s32.totalorder %s112, 0
      %s115 = sadd.s32 %s114, 1
      %s116 = scalar_select %p113, %s114, %s115
      %p119 = pneg %p113
      %p120 = scmp.eq.s32.totalorder %s12, 1
      %p121 = por %p119, %p120
      %p122 = scmp.ne.s32.totalorder %s114, %s117
      %p123 = scmp.eq.s32.totalorder %s12, 0
      %p124 = por %p122, %p123
      %p125 = scmp.ne.s32.totalorder %s114, %s117
      %p126 = scmp.eq.s32.totalorder %s17, 1
      %p127 = por %p125, %p126
      %p128 = scmp.ne.s32.totalorder %s117, %s118
      %p129 = scmp.eq.s32.totalorder %s17, 0
      %p130 = por %p128, %p129
      %p131 = scmp.ne.s32.totalorder %s117, %s118
      %p132 = scmp.eq.s32.totalorder %s18, 1
      %p133 = por %p131, %p132
      %p135 = scmp.ne.s32.totalorder %s118, %s134
      %p136 = scmp.eq.s32.totalorder %s18, 0
      %p137 = por %p135, %p136
      %p138 = scmp.le.s32.totalorder 1, %s12
      %p139 = scmp.lt.s32.totalorder %s12, 3
      %p140 = pnand %p138, %p139
      %p141 = pneg %p140
      // Predicated region
      $region9: #{transformer_encoder_layer.4} parent=5 // pred_check
        _
      $region10: #{transformer_encoder_layer.4} parent=5 // pred_check_branch
        %143 = sbr.rel (%p140) target = $region12
      $region11: #{transformer_encoder_layer.4} parent=5 // pred_region
        %s144 = ssub.s32 %s12, 1
        // Predicated region
        $region13: #{transformer_encoder_layer.4} parent=11 // pred_check
          %p145 = pneg %p76
        $region14: #{transformer_encoder_layer.4} parent=11 // pred_check_branch
          %147 = sbr.rel (%p145) target = $region16
        $region15: #{transformer_encoder_layer.4} parent=11 // pred_region
          %p148 = scmp.lt.s32.totalorder %s22, 0
          %s149 = scalar_select %p148, %s22, 0
          %s150 = smul.addr %s149, 8
          %s151 = scalar_lea.vmem %s1, %s150
        $region16: #{transformer_encoder_layer.4} parent=11 // pred_fallthru
          _
        // Predicated region
        $region17: #{transformer_encoder_layer.4} parent=11 // pred_check
          %p152 = pneg %p102
        $region18: #{transformer_encoder_layer.4} parent=11 // pred_check_branch
          %154 = sbr.rel (%p152) target = $region20
        $region19: #{transformer_encoder_layer.4} parent=11 // pred_region
          %p155 = scmp.lt.s32.totalorder %s22, 0
          %s156 = scalar_select %p155, %s22, 0
          %s157 = scalar_lea.vmem %s2, %s156
        $region20: #{transformer_encoder_layer.4} parent=11 // pred_fallthru
          _
      $region12: #{transformer_encoder_layer.4} parent=5 // pred_fallthru
        _
      %p158 = scmp.lt.s32.totalorder %s12, 2
      // Predicated region
      $region21: #{transformer_encoder_layer.4} parent=5 // pred_check
        %p159 = pneg %p158
      $region22: #{transformer_encoder_layer.4} parent=5 // pred_check_branch
        %161 = sbr.rel (%p159) target = $region24
      $region23: #{transformer_encoder_layer.4} parent=5 // pred_region
        // Predicated region
        $region25: #{transformer_encoder_layer.4} parent=23 // pred_check
          %p162 = pneg %p44
        $region26: #{transformer_encoder_layer.4} parent=23 // pred_check_branch
          %164 = sbr.rel (%p162) target = $region28
        $region27: #{transformer_encoder_layer.4} parent=23 // pred_region
          %s165 = sand.u32 %s34, 1
          %s166 = scalar_lea.sflag [#allocation3], %s165
          %s167 = sand.u32 %s34, 1
          %s168 = smul.addr %s167, 8
          %s169 = scalar_lea.vmem [#allocation2], %s168
          %s171 = ssub.s32 128, 128
          %172 = vsyncadd %s166, %s171
          %s173 = smul.addr %s19, 128
          %s174 = scalar_lea.hbm %s0, %s173
          %s176 = sshll.u32 %s169, 4
          %s177 = int_to_ptr.vmem [resolvable:$true] %s176
          %179 = dma.hbm_to_vmem [thread:$0]  %s174, 128, %s177, %s166
        $region28: #{transformer_encoder_layer.4} parent=23 // pred_fallthru
          _
      $region24: #{transformer_encoder_layer.4} parent=5 // pred_fallthru
        _
      %p180 = scmp.le.s32.totalorder 1, %s12
      %p181 = scmp.lt.s32.totalorder %s12, 3
      %p182 = pnand %p180, %p181
      %p183 = pneg %p182
      // Predicated region
      $region29: #{transformer_encoder_layer.4} parent=5 // pred_check
        _
      $region30: #{transformer_encoder_layer.4} parent=5 // pred_check_branch
        %185 = sbr.rel (%p182) target = $region32
      $region31: #{transformer_encoder_layer.4} parent=5 // pred_region
        %s186 = ssub.s32 %s12, 1
        %s187 = sand.u32 %s37, 1
        %s188 = scalar_lea.sflag [#allocation3], %s187
        %s189 = sand.u32 %s37, 1
        %s190 = smul.addr %s189, 8
        %s191 = scalar_lea.vmem [#allocation2], %s190
        // Predicated region
        $region33: #{transformer_encoder_layer.4} parent=31 // pred_check
          %p192 = pneg %p50
        $region34: #{transformer_encoder_layer.4} parent=31 // pred_check_branch
          %194 = sbr.rel (%p192) target = $region36
        $region35: #{transformer_encoder_layer.4} parent=31 // pred_region
          %195 = dma.done %s188, 128
        $region36: #{transformer_encoder_layer.4} parent=31 // pred_fallthru
          _
        %s196 = sand.u32 %s37, 1
        %s197 = scalar_lea.sflag [#allocation3], %s196
        %s198 = sand.u32 %s37, 1
        %s199 = smul.addr %s198, 8
        %s200 = scalar_lea.vmem [#allocation2], %s199
        %p201 = pneg %p50
        %p202 = pneg %p47
        %p203 = scmp.lt.s32.totalorder %s22, 0
        %s204 = scalar_select %p203, %s22, 0
        %s205 = smul.addr %s204, 8
        %s206 = scalar_lea.vmem %s1, %s205
        %p207 = pneg %p76
        %p208 = pneg %p73
        %p209 = scmp.lt.s32.totalorder %s22, 0
        %s210 = scalar_select %p209, %s22, 0
        %s211 = scalar_lea.vmem %s2, %s210
        %p212 = pneg %p102
        %p213 = pneg %p99
        %p214 = pneg %p130
        %p215 = pneg %p127
        %p216 = scmp.lt.s32.totalorder %s21, 1
        %s217 = scalar_select %p216, %s21, 1
        %p218 = scmp.lt.s32.totalorder %s22, 0
        %s219 = scalar_select %p218, %s22, 0
        %s220 = sadd.s32 %s219, %s217
        %s221 = smul.addr %s220, 8
        %s222 = scalar_lea.vmem %s3, %s221
        %p223 = scmp.lt.s32.totalorder %s22, 0
        %s224 = scalar_select %p223, %s22, 0
        %s225 = smul.addr %s224, 8
        %s226 = scalar_lea.vmem %s1, %s225
        %p227 = scmp.lt.s32.totalorder %s22, 0
        %s228 = scalar_select %p227, %s22, 0
        %s229 = scalar_lea.vmem %s2, %s228
        %p230 = scmp.lt.s32.totalorder %s21, 1
        %s231 = scalar_select %p230, %s21, 1
        %p232 = scmp.lt.s32.totalorder %s22, 0
        %s233 = scalar_select %p232, %s22, 0
        %s234 = sadd.s32 %s233, %s231
        %s235 = smul.addr %s234, 8
        %s236 = scalar_lea.vmem %s3, %s235
        %v237 = vld [vmem:[%s191] sm:$0xff]
        %v238 = vld [vmem:[%s226] sm:$0xff]
        %v239 = vld [vmem:[%s226 + $0x8] sm:$0xff]
        %v240 = vld [vmem:[%s226 + $0x10] sm:$0xff]
        %v241 = vld [vmem:[%s226 + $0x18] sm:$0xff]
        %v242 = vld [vmem:[%s229] sm:$0x1]
        %v244 = vlaneseq
        %v245 = vshrl.u32 %v244, 7
        %v246 = vsub.s32 0, %v245
        %v247 = vrot.slane %v242, %v246
        %vm249 = vcmask 261120
        %v251 = vsel %vm249, %v237, 0
        %253 = vmatprep.subr.mxu0 0.0
        %254 = vmatpush1.msra.mxu0 %v238
        %255 = vmatprep.subr.mxu0 0.0
        %256 = vmatpush1.msra.mxu0 %v239
        %257 = vmatprep.subr.mxu0 0.0
        %258 = vmatpush1.msra.mxu0 %v240
        %259 = vmatprep.subr.mxu0 0.0
        %260 = vmatpush1.msra.mxu0 %v241
        %261 = vmatprep.subr.mxu0 0.0
        %262 = vmatpush1.msra.mxu0 0.0
        %263 = vmatprep.subr.mxu0 0.0
        %264 = vmatpush1.msra.mxu0 0.0
        %265 = vmatprep.subr.mxu0 0.0
        %266 = vmatpush1.msra.mxu0 0.0
        %267 = vmatprep.subr.mxu0 0.0
        %268 = vmatpush1.msra.mxu0 0.0
        %269 = vmatprep.subr.mxu0 0.0
        %270 = vmatpush1.msra.mxu0 0.0
        %271 = vmatprep.subr.mxu0 0.0
        %272 = vmatpush1.msra.mxu0 0.0
        %273 = vmatprep.subr.mxu0 0.0
        %274 = vmatpush1.msra.mxu0 0.0
        %275 = vmatprep.subr.mxu0 0.0
        %276 = vmatpush1.msra.mxu0 0.0
        %277 = vmatprep.subr.mxu0 0.0
        %278 = vmatpush1.msra.mxu0 0.0
        %279 = vmatprep.subr.mxu0 0.0
        %280 = vmatpush1.msra.mxu0 0.0
        %281 = vmatprep.subr.mxu0 0.0
        %282 = vmatpush1.msra.mxu0 0.0
        %283 = vmatprep.subr.mxu0 0.0
        %284 = vmatpush1.msra.mxu0 0.0
        %285 = vmatprep.subr.mxu0 0.0
        %286 = vmatpush1.msra.mxu0 0.0
        %287 = vmatprep.subr.mxu0 0.0
        %288 = vmatpush1.msra.mxu0 0.0
        %289 = vmatprep.subr.mxu0 0.0
        %290 = vmatpush1.msra.mxu0 0.0
        %291 = vmatprep.subr.mxu0 0.0
        %292 = vmatpush1.msra.mxu0 0.0
        %293 = vmatprep.subr.mxu0 0.0
        %294 = vmatpush1.msra.mxu0 0.0
        %295 = vmatprep.subr.mxu0 0.0
        %296 = vmatpush1.msra.mxu0 0.0
        %297 = vmatprep.subr.mxu0 0.0
        %298 = vmatpush1.msra.mxu0 0.0
        %299 = vmatprep.subr.mxu0 0.0
        %300 = vmatpush1.msra.mxu0 0.0
        %301 = vmatprep.subr.mxu0 0.0
        %302 = vmatpush1.msra.mxu0 0.0
        %303 = vmatprep.subr.mxu0 0.0
        %304 = vmatpush1.msra.mxu0 0.0
        %305 = vmatprep.subr.mxu0 0.0
        %306 = vmatpush1.msra.mxu0 0.0
        %307 = vmatprep.subr.mxu0 0.0
        %308 = vmatpush1.msra.mxu0 0.0
        %309 = vmatprep.subr.mxu0 0.0
        %310 = vmatpush1.msra.mxu0 0.0
        %311 = vmatprep.subr.mxu0 0.0
        %312 = vmatpush1.msra.mxu0 0.0
        %313 = vmatprep.subr.mxu0 0.0
        %314 = vmatpush1.msra.mxu0 0.0
        %315 = vmatprep.subr.mxu0 0.0
        %316 = vmatpush1.msra.mxu0 0.0
        %317 = vmatprep.mubr.f32.mxu0 0.0
        %318 = vmatmul.mubr.f32.gmra.mrb[0].mxu0 %v251
        %v319 = vpop.f32.mrb[0].mxu0
        %v320 = vadd.f32 %v247, %v319
        %v321 = vpop.f32.mrb[0].mxu0
        %322 = vdwg.mxu0
        %vm323 = vcmask 785408
        %324 = vst.msk [vmem:[%s236] sm:$0xff] %vm323, %v320
        %p325 = scmp.lt.s32.totalorder %s21, 1
        %s326 = scalar_select %p325, %s21, 1
        %p327 = scmp.lt.s32.totalorder %s22, 0
        %s328 = scalar_select %p327, %s22, 0
        %s329 = sadd.s32 %s328, %s326
        %s330 = smul.addr %s329, 8
        %s331 = scalar_lea.vmem %s3, %s330
        // Predicated region
        $region37: #{transformer_encoder_layer.4} parent=31 // pred_check
          %p332 = pneg %p127
        $region38: #{transformer_encoder_layer.4} parent=31 // pred_check_branch
          %334 = sbr.rel (%p332) target = $region40
        $region39: #{transformer_encoder_layer.4} parent=31 // pred_region
          _
        $region40: #{transformer_encoder_layer.4} parent=31 // pred_fallthru
          _
      $region32: #{transformer_encoder_layer.4} parent=5 // pred_fallthru
        _
      %p335 = scmp.le.s32.totalorder 2, %s12
      // Predicated region
      $region41: #{transformer_encoder_layer.4} parent=5 // pred_check
        %p336 = pneg %p335
      $region42: #{transformer_encoder_layer.4} parent=5 // pred_check_branch
        %338 = sbr.rel (%p336) target = $region44
      $region43: #{transformer_encoder_layer.4} parent=5 // pred_region
        %s339 = ssub.s32 %s12, 2
        // Predicated region
        $region45: #{transformer_encoder_layer.4} parent=43 // pred_check
          %p340 = pneg %p133
        $region46: #{transformer_encoder_layer.4} parent=43 // pred_check_branch
          %342 = sbr.rel (%p340) target = $region48
        $region47: #{transformer_encoder_layer.4} parent=43 // pred_region
          %p343 = scmp.lt.s32.totalorder %s23, 1
          %s344 = scalar_select %p343, %s23, 1
          %p345 = scmp.lt.s32.totalorder %s24, 0
          %s346 = scalar_select %p345, %s24, 0
          %s347 = sadd.s32 %s346, %s344
          %s348 = smul.addr %s347, 8
          %s349 = scalar_lea.vmem %s3, %s348
        $region48: #{transformer_encoder_layer.4} parent=43 // pred_fallthru
          _
      $region44: #{transformer_encoder_layer.4} parent=5 // pred_fallthru
        _
    $region6: #{transformer_encoder_layer.4} parent=1 // loop_footer
      %s16 = sadd.s32 1, %s12
    $region7: #{transformer_encoder_layer.4} parent=1 // loop_footer_branch
      %11 = sbr.rel target = $region3
    $region8: #{transformer_encoder_layer.4} parent=1 // loop_exit
      _
    %350 = vsyncpa [#allocation3], 1
    %s351 = scalar_lea.sflag [#allocation3], 1
    %352 = vsyncpa %s351, 1

// kernel: transformer_encoder_layer.6
$region0: #{transformer_encoder_layer.6}
  #allocation0 [shape = 'u32[]', space=smem, size = 0x4, offset = 0x4, fixed_abs, tag = 'smem constant byte address 0x4 - core index']
  #allocation1 [shape = 'u32[144,128]{1,0:T(1,128)}', space=vmem, size = 0x12000, scoped, tag = 'internal scratch']
  %s0 = inlined_call_operand.vmem [shape: f32[16,32], index: 0, kind: input, shape index: {}]
  %s1 = inlined_call_operand.vmem [shape: f32[32,32], index: 1, kind: input, shape index: {}]
  %s2 = inlined_call_operand.vmem [shape: f32[1,32], index: 2, kind: input, shape index: {}]
  %s3 = inlined_call_operand.vmem [shape: f32[16,32], index: 3, kind: input, shape index: {}]
  %s4 = inlined_call_operand.vmem [shape: f32[1,32], index: 4, kind: input, shape index: {}]
  %s5 = inlined_call_operand.vmem [shape: f32[1,32], index: 5, kind: input, shape index: {}]
  %s6 = inlined_call_operand.vmem [shape: f32[16,32], index: 6, kind: output, shape index: {}]
  %s7 = sld [smem:[#allocation0]]
  $region57: #{transformer_encoder_layer.6} parent=0
    _
  %s9 = ssub.s32 1, %s7
  %s10 = scalar_select 0, %s9, %s7
  loop: start=0, step=1, limit=4
  $region2: #{transformer_encoder_layer.6} parent=0 // loop_pre_header
    _
  $region3: #{transformer_encoder_layer.6} parent=0 // loop_header
    %s12 = sphi 0, %s16
    %p13 = scmp.ge.s32.totalorder %s12, 4
    %s22 = sphi 0, %s24
    %s25 = sphi 0, %s22
    %s26 = sphi 0, %s25
    %s42 = sphi 0, %s26
    %s46 = sphi 0, %s46
    %s48 = sphi 0, %s46
    %s49 = sphi 0, %s48
    %s63 = sphi 0, %s49
    %s67 = sphi 0, %s67
    %s69 = sphi 0, %s67
    %s70 = sphi 0, %s69
    %s84 = sphi 0, %s70
    %s90 = sphi 0, %s92
    %s93 = sphi 0, %s90
    %s94 = sphi 0, %s93
    %s110 = sphi 0, %s94
    %s114 = sphi 0, %s114
    %s116 = sphi 0, %s114
    %s117 = sphi 0, %s116
    %s131 = sphi 0, %s117
    %s135 = sphi 0, %s135
    %s137 = sphi 0, %s135
    %s138 = sphi 0, %s137
    %s152 = sphi 0, %s138
    %s158 = sphi 0, %s160
    %s161 = sphi 0, %s158
    %s162 = sphi 0, %s161
    %s178 = sphi 0, %s162
  $region4: #{transformer_encoder_layer.6} parent=0 // loop_header_branch
    %15 = sbr.rel (%p13) target = $region8
  $region5: #{transformer_encoder_layer.6} parent=0 // loop_body
    %s17 = ssub.s32 %s12, 1
    %s18 = ssub.s32 %s12, 2
    %s19 = sadd.s32 %s12, 1
    %s20 = ssub.s32 %s12, %s19
    %p21 = scmp.eq.s32.totalorder %s20, 0
    %s23 = sadd.s32 %s22, 1
    %s24 = scalar_select %p21, %s22, %s23
    %p27 = pneg %p21
    %p28 = scmp.eq.s32.totalorder %s12, 1
    %p29 = por %p27, %p28
    %p30 = scmp.ne.s32.totalorder %s22, %s25
    %p31 = scmp.eq.s32.totalorder %s12, 0
    %p32 = por %p30, %p31
    %p33 = scmp.ne.s32.totalorder %s22, %s25
    %p34 = scmp.eq.s32.totalorder %s17, 1
    %p35 = por %p33, %p34
    %p36 = scmp.ne.s32.totalorder %s25, %s26
    %p37 = scmp.eq.s32.totalorder %s17, 0
    %p38 = por %p36, %p37
    %p39 = scmp.ne.s32.totalorder %s25, %s26
    %p40 = scmp.eq.s32.totalorder %s18, 1
    %p41 = por %p39, %p40
    %p43 = scmp.ne.s32.totalorder %s26, %s42
    %p44 = scmp.eq.s32.totalorder %s18, 0
    %p45 = por %p43, %p44
    %s47 = sadd.s32 %s46, 1
    %p50 = scmp.eq.s32.totalorder %s12, 1
    %p51 = scmp.ne.s32.totalorder %s46, %s48
    %p52 = scmp.eq.s32.totalorder %s12, 0
    %p53 = por %p51, %p52
    %p54 = scmp.ne.s32.totalorder %s46, %s48
    %p55 = scmp.eq.s32.totalorder %s17, 1
    %p56 = por %p54, %p55
    %p57 = scmp.ne.s32.totalorder %s48, %s49
    %p58 = scmp.eq.s32.totalorder %s17, 0
    %p59 = por %p57, %p58
    %p60 = scmp.ne.s32.totalorder %s48, %s49
    %p61 = scmp.eq.s32.totalorder %s18, 1
    %p62 = por %p60, %p61
    %p64 = scmp.ne.s32.totalorder %s49, %s63
    %p65 = scmp.eq.s32.totalorder %s18, 0
    %p66 = por %p64, %p65
    %s68 = sadd.s32 %s67, 1
    %p71 = scmp.eq.s32.totalorder %s12, 1
    %p72 = scmp.ne.s32.totalorder %s67, %s69
    %p73 = scmp.eq.s32.totalorder %s12, 0
    %p74 = por %p72, %p73
    %p75 = scmp.ne.s32.totalorder %s67, %s69
    %p76 = scmp.eq.s32.totalorder %s17, 1
    %p77 = por %p75, %p76
    %p78 = scmp.ne.s32.totalorder %s69, %s70
    %p79 = scmp.eq.s32.totalorder %s17, 0
    %p80 = por %p78, %p79
    %p81 = scmp.ne.s32.totalorder %s69, %s70
    %p82 = scmp.eq.s32.totalorder %s18, 1
    %p83 = por %p81, %p82
    %p85 = scmp.ne.s32.totalorder %s70, %s84
    %p86 = scmp.eq.s32.totalorder %s18, 0
    %p87 = por %p85, %p86
    %s88 = ssub.s32 %s12, %s19
    %p89 = scmp.eq.s32.totalorder %s88, 0
    %s91 = sadd.s32 %s90, 1
    %s92 = scalar_select %p89, %s90, %s91
    %p95 = pneg %p89
    %p96 = scmp.eq.s32.totalorder %s12, 1
    %p97 = por %p95, %p96
    %p98 = scmp.ne.s32.totalorder %s90, %s93
    %p99 = scmp.eq.s32.totalorder %s12, 0
    %p100 = por %p98, %p99
    %p101 = scmp.ne.s32.totalorder %s90, %s93
    %p102 = scmp.eq.s32.totalorder %s17, 1
    %p103 = por %p101, %p102
    %p104 = scmp.ne.s32.totalorder %s93, %s94
    %p105 = scmp.eq.s32.totalorder %s17, 0
    %p106 = por %p104, %p105
    %p107 = scmp.ne.s32.totalorder %s93, %s94
    %p108 = scmp.eq.s32.totalorder %s18, 1
    %p109 = por %p107, %p108
    %p111 = scmp.ne.s32.totalorder %s94, %s110
    %p112 = scmp.eq.s32.totalorder %s18, 0
    %p113 = por %p111, %p112
    %s115 = sadd.s32 %s114, 1
    %p118 = scmp.eq.s32.totalorder %s12, 1
    %p119 = scmp.ne.s32.totalorder %s114, %s116
    %p120 = scmp.eq.s32.totalorder %s12, 0
    %p121 = por %p119, %p120
    %p122 = scmp.ne.s32.totalorder %s114, %s116
    %p123 = scmp.eq.s32.totalorder %s17, 1
    %p124 = por %p122, %p123
    %p125 = scmp.ne.s32.totalorder %s116, %s117
    %p126 = scmp.eq.s32.totalorder %s17, 0
    %p127 = por %p125, %p126
    %p128 = scmp.ne.s32.totalorder %s116, %s117
    %p129 = scmp.eq.s32.totalorder %s18, 1
    %p130 = por %p128, %p129
    %p132 = scmp.ne.s32.totalorder %s117, %s131
    %p133 = scmp.eq.s32.totalorder %s18, 0
    %p134 = por %p132, %p133
    %s136 = sadd.s32 %s135, 1
    %p139 = scmp.eq.s32.totalorder %s12, 1
    %p140 = scmp.ne.s32.totalorder %s135, %s137
    %p141 = scmp.eq.s32.totalorder %s12, 0
    %p142 = por %p140, %p141
    %p143 = scmp.ne.s32.totalorder %s135, %s137
    %p144 = scmp.eq.s32.totalorder %s17, 1
    %p145 = por %p143, %p144
    %p146 = scmp.ne.s32.totalorder %s137, %s138
    %p147 = scmp.eq.s32.totalorder %s17, 0
    %p148 = por %p146, %p147
    %p149 = scmp.ne.s32.totalorder %s137, %s138
    %p150 = scmp.eq.s32.totalorder %s18, 1
    %p151 = por %p149, %p150
    %p153 = scmp.ne.s32.totalorder %s138, %s152
    %p154 = scmp.eq.s32.totalorder %s18, 0
    %p155 = por %p153, %p154
    %s156 = ssub.s32 %s12, %s19
    %p157 = scmp.eq.s32.totalorder %s156, 0
    %s159 = sadd.s32 %s158, 1
    %s160 = scalar_select %p157, %s158, %s159
    %p163 = pneg %p157
    %p164 = scmp.eq.s32.totalorder %s12, 1
    %p165 = por %p163, %p164
    %p166 = scmp.ne.s32.totalorder %s158, %s161
    %p167 = scmp.eq.s32.totalorder %s12, 0
    %p168 = por %p166, %p167
    %p169 = scmp.ne.s32.totalorder %s158, %s161
    %p170 = scmp.eq.s32.totalorder %s17, 1
    %p171 = por %p169, %p170
    %p172 = scmp.ne.s32.totalorder %s161, %s162
    %p173 = scmp.eq.s32.totalorder %s17, 0
    %p174 = por %p172, %p173
    %p175 = scmp.ne.s32.totalorder %s161, %s162
    %p176 = scmp.eq.s32.totalorder %s18, 1
    %p177 = por %p175, %p176
    %p179 = scmp.ne.s32.totalorder %s162, %s178
    %p180 = scmp.eq.s32.totalorder %s18, 0
    %p181 = por %p179, %p180
    %p182 = scmp.le.s32.totalorder 1, %s12
    %p183 = scmp.lt.s32.totalorder %s12, 3
    %p184 = pnand %p182, %p183
    %p185 = pneg %p184
    // Predicated region
    $region9: #{transformer_encoder_layer.6} parent=5 // pred_check
      _
    $region10: #{transformer_encoder_layer.6} parent=5 // pred_check_branch
      %187 = sbr.rel (%p184) target = $region12
    $region11: #{transformer_encoder_layer.6} parent=5 // pred_region
      %s188 = ssub.s32 %s12, 1
      // Predicated region
      $region13: #{transformer_encoder_layer.6} parent=11 // pred_check
        %p189 = pneg %p59
      $region14: #{transformer_encoder_layer.6} parent=11 // pred_check_branch
        %191 = sbr.rel (%p189) target = $region16
      $region15: #{transformer_encoder_layer.6} parent=11 // pred_region
        _
      $region16: #{transformer_encoder_layer.6} parent=11 // pred_fallthru
        _
      // Predicated region
      $region17: #{transformer_encoder_layer.6} parent=11 // pred_check
        %p192 = pneg %p80
      $region18: #{transformer_encoder_layer.6} parent=11 // pred_check_branch
        %194 = sbr.rel (%p192) target = $region20
      $region19: #{transformer_encoder_layer.6} parent=11 // pred_region
        _
      $region20: #{transformer_encoder_layer.6} parent=11 // pred_fallthru
        _
      // Predicated region
      $region21: #{transformer_encoder_layer.6} parent=11 // pred_check
        %p195 = pneg %p127
      $region22: #{transformer_encoder_layer.6} parent=11 // pred_check_branch
        %197 = sbr.rel (%p195) target = $region24
      $region23: #{transformer_encoder_layer.6} parent=11 // pred_region
        _
      $region24: #{transformer_encoder_layer.6} parent=11 // pred_fallthru
        _
      // Predicated region
      $region25: #{transformer_encoder_layer.6} parent=11 // pred_check
        %p198 = pneg %p148
      $region26: #{transformer_encoder_layer.6} parent=11 // pred_check_branch
        %200 = sbr.rel (%p198) target = $region28
      $region27: #{transformer_encoder_layer.6} parent=11 // pred_region
        _
      $region28: #{transformer_encoder_layer.6} parent=11 // pred_fallthru
        _
    $region12: #{transformer_encoder_layer.6} parent=5 // pred_fallthru
      _
    %p201 = scmp.lt.s32.totalorder %s12, 2
    // Predicated region
    $region29: #{transformer_encoder_layer.6} parent=5 // pred_check
      %p202 = pneg %p201
    $region30: #{transformer_encoder_layer.6} parent=5 // pred_check_branch
      %204 = sbr.rel (%p202) target = $region32
    $region31: #{transformer_encoder_layer.6} parent=5 // pred_region
      // Predicated region
      $region33: #{transformer_encoder_layer.6} parent=31 // pred_check
        %p205 = pneg %p32
      $region34: #{transformer_encoder_layer.6} parent=31 // pred_check_branch
        %207 = sbr.rel (%p205) target = $region36
      $region35: #{transformer_encoder_layer.6} parent=31 // pred_region
        %p208 = scmp.lt.s32.totalorder %s12, 1
        %s209 = scalar_select %p208, %s12, 1
        %s210 = smul.addr %s209, 8
        %s211 = scalar_lea.vmem %s0, %s210
      $region36: #{transformer_encoder_layer.6} parent=31 // pred_fallthru
        _
      // Predicated region
      $region37: #{transformer_encoder_layer.6} parent=31 // pred_check
        %p212 = pneg %p100
      $region38: #{transformer_encoder_layer.6} parent=31 // pred_check_branch
        %214 = sbr.rel (%p212) target = $region40
      $region39: #{transformer_encoder_layer.6} parent=31 // pred_region
        %p215 = scmp.lt.s32.totalorder %s12, 1
        %s216 = scalar_select %p215, %s12, 1
        %s217 = smul.addr %s216, 8
        %s218 = scalar_lea.vmem %s3, %s217
      $region40: #{transformer_encoder_layer.6} parent=31 // pred_fallthru
        _
    $region32: #{transformer_encoder_layer.6} parent=5 // pred_fallthru
      _
    %p219 = scmp.le.s32.totalorder 1, %s12
    %p220 = scmp.lt.s32.totalorder %s12, 3
    %p221 = pnand %p219, %p220
    %p222 = pneg %p221
    // Predicated region
    $region41: #{transformer_encoder_layer.6} parent=5 // pred_check
      _
    $region42: #{transformer_encoder_layer.6} parent=5 // pred_check_branch
      %224 = sbr.rel (%p221) target = $region44
    $region43: #{transformer_encoder_layer.6} parent=5 // pred_region
      %s225 = ssub.s32 %s12, 1
      %p226 = scmp.lt.s32.totalorder %s17, 1
      %s227 = scalar_select %p226, %s17, 1
      %s228 = smul.addr %s227, 8
      %s229 = scalar_lea.vmem %s0, %s228
      %p230 = pneg %p38
      %p231 = pneg %p35
      %p232 = pneg %p59
      %p233 = pneg %p56
      %p234 = pneg %p80
      %p235 = pneg %p77
      %p236 = scmp.lt.s32.totalorder %s17, 1
      %s237 = scalar_select %p236, %s17, 1
      %s238 = smul.addr %s237, 8
      %s239 = scalar_lea.vmem %s3, %s238
      %p240 = pneg %p106
      %p241 = pneg %p103
      %p242 = pneg %p127
      %p243 = pneg %p124
      %p244 = pneg %p148
      %p245 = pneg %p145
      %p246 = pneg %p174
      %p247 = pneg %p171
      %p248 = scmp.lt.s32.totalorder %s17, 1
      %s249 = scalar_select %p248, %s17, 1
      %s250 = smul.addr %s249, 8
      %s251 = scalar_lea.vmem %s6, %s250
      %p252 = scmp.lt.s32.totalorder %s17, 1
      %s253 = scalar_select %p252, %s17, 1
      %s254 = smul.addr %s253, 8
      %s255 = scalar_lea.vmem %s0, %s254
      %p256 = scmp.lt.s32.totalorder %s17, 1
      %s257 = scalar_select %p256, %s17, 1
      %s258 = smul.addr %s257, 8
      %s259 = scalar_lea.vmem %s3, %s258
      %p260 = scmp.lt.s32.totalorder %s17, 1
      %s261 = scalar_select %p260, %s17, 1
      %s262 = smul.addr %s261, 8
      %s263 = scalar_lea.vmem %s6, %s262
      %v264 = vld [vmem:[%s255] sm:$0xff]
      %v265 = vld [vmem:[%s1] sm:$0xff]
      %v266 = vld [vmem:[%s1 + $0x8] sm:$0xff]
      %v267 = vld [vmem:[%s1 + $0x10] sm:$0xff]
      %v268 = vld [vmem:[%s1 + $0x18] sm:$0xff]
      %v269 = vld [vmem:[%s2] sm:$0x1]
      %v271 = vlaneseq
      %v272 = vshrl.u32 %v271, 7
      %v273 = vsub.s32 0, %v272
      %v274 = vrot.slane %v269, %v273
      %vm276 = vcmask 261120
      %v278 = vsel %vm276, %v264, 0
      %280 = vmatprep.subr.mxu0 0.0
      %281 = vmatpush1.msra.mxu0 %v265
      %282 = vmatprep.subr.mxu0 0.0
      %283 = vmatpush1.msra.mxu0 %v266
      %284 = vmatprep.subr.mxu0 0.0
      %285 = vmatpush1.msra.mxu0 %v267
      %286 = vmatprep.subr.mxu0 0.0
      %287 = vmatpush1.msra.mxu0 %v268
      %288 = vmatprep.subr.mxu0 0.0
      %289 = vmatpush1.msra.mxu0 0.0
      %290 = vmatprep.subr.mxu0 0.0
      %291 = vmatpush1.msra.mxu0 0.0
      %292 = vmatprep.subr.mxu0 0.0
      %293 = vmatpush1.msra.mxu0 0.0
      %294 = vmatprep.subr.mxu0 0.0
      %295 = vmatpush1.msra.mxu0 0.0
      %296 = vmatprep.subr.mxu0 0.0
      %297 = vmatpush1.msra.mxu0 0.0
      %298 = vmatprep.subr.mxu0 0.0
      %299 = vmatpush1.msra.mxu0 0.0
      %300 = vmatprep.subr.mxu0 0.0
      %301 = vmatpush1.msra.mxu0 0.0
      %302 = vmatprep.subr.mxu0 0.0
      %303 = vmatpush1.msra.mxu0 0.0
      %304 = vmatprep.subr.mxu0 0.0
      %305 = vmatpush1.msra.mxu0 0.0
      %306 = vmatprep.subr.mxu0 0.0
      %307 = vmatpush1.msra.mxu0 0.0
      %308 = vmatprep.subr.mxu0 0.0
      %309 = vmatpush1.msra.mxu0 0.0
      %310 = vmatprep.subr.mxu0 0.0
      %311 = vmatpush1.msra.mxu0 0.0
      %312 = vmatprep.subr.mxu0 0.0
      %313 = vmatpush1.msra.mxu0 0.0
      %314 = vmatprep.subr.mxu0 0.0
      %315 = vmatpush1.msra.mxu0 0.0
      %316 = vmatprep.subr.mxu0 0.0
      %317 = vmatpush1.msra.mxu0 0.0
      %318 = vmatprep.subr.mxu0 0.0
      %319 = vmatpush1.msra.mxu0 0.0
      %320 = vmatprep.subr.mxu0 0.0
      %321 = vmatpush1.msra.mxu0 0.0
      %322 = vmatprep.subr.mxu0 0.0
      %323 = vmatpush1.msra.mxu0 0.0
      %324 = vmatprep.subr.mxu0 0.0
      %325 = vmatpush1.msra.mxu0 0.0
      %326 = vmatprep.subr.mxu0 0.0
      %327 = vmatpush1.msra.mxu0 0.0
      %328 = vmatprep.subr.mxu0 0.0
      %329 = vmatpush1.msra.mxu0 0.0
      %330 = vmatprep.subr.mxu0 0.0
      %331 = vmatpush1.msra.mxu0 0.0
      %332 = vmatprep.subr.mxu0 0.0
      %333 = vmatpush1.msra.mxu0 0.0
      %334 = vmatprep.subr.mxu0 0.0
      %335 = vmatpush1.msra.mxu0 0.0
      %336 = vmatprep.subr.mxu0 0.0
      %337 = vmatpush1.msra.mxu0 0.0
      %338 = vmatprep.subr.mxu0 0.0
      %339 = vmatpush1.msra.mxu0 0.0
      %340 = vmatprep.subr.mxu0 0.0
      %341 = vmatpush1.msra.mxu0 0.0
      %342 = vmatprep.subr.mxu0 0.0
      %343 = vmatpush1.msra.mxu0 0.0
      %344 = vmatprep.mubr.f32.mxu0 0.0
      %345 = vmatmul.mubr.f32.gmra.mrb[0].mxu0 %v278
      %v346 = vpop.f32.mrb[0].mxu0
      %v347 = vadd.f32 %v274, %v346
      %v348 = vpop.f32.mrb[0].mxu0
      %349 = vdwg.mxu0
      %v350 = vld [vmem:[%s259] sm:$0xff]
      %v351 = vadd.f32 %v347, %v350
      %v352 = vsel %vm276, %v351, 0.0
      %353 = vadd.xlane.f32.xlu0 %v352
      %v354 = vpop.xlane.xlu0 %353
      %v355 = vrcp.pop 32.0
      %v356 = vmul.f32 %v354, %v355
      %v357 = vsub.f32 %v351, %v356
      %v358 = vmul.f32 %v357, %v357
      %v359 = vsel %vm276, %v358, 0.0
      %360 = vadd.xlane.f32.xlu0 %v359
      %v361 = vpop.xlane.xlu0 %360
      %v362 = vmul.f32 %v361, %v355
      %v363 = vadd.f32 %v362, 1e-05
      %v364 = vrsqrt.pop %v363
      %v365 = vmul.f32 %v357, %v364
      %v366 = vld [vmem:[%s4] sm:$0x1]
      %v368 = vlaneseq
      %v369 = vshrl.u32 %v368, 7
      %v370 = vsub.s32 0, %v369
      %v371 = vrot.slane %v366, %v370
      %v373 = vmul.f32 %v365, %v371
      %v374 = vld [vmem:[%s5] sm:$0x1]
      %v376 = vlaneseq
      %v377 = vshrl.u32 %v376, 7
      %v378 = vsub.s32 0, %v377
      %v379 = vrot.slane %v374, %v378
      %v381 = vadd.f32 %v373, %v379
      %382 = vst.msk [vmem:[%s263] sm:$0xff] %vm276, %v381
      %p383 = scmp.lt.s32.totalorder %s17, 1
      %s384 = scalar_select %p383, %s17, 1
      %s385 = smul.addr %s384, 8
      %s386 = scalar_lea.vmem %s6, %s385
      // Predicated region
      $region45: #{transformer_encoder_layer.6} parent=43 // pred_check
        %p387 = pneg %p171
      $region46: #{transformer_encoder_layer.6} parent=43 // pred_check_branch
        %389 = sbr.rel (%p387) target = $region48
      $region47: #{transformer_encoder_layer.6} parent=43 // pred_region
        _
      $region48: #{transformer_encoder_layer.6} parent=43 // pred_fallthru
        _
    $region44: #{transformer_encoder_layer.6} parent=5 // pred_fallthru
      _
    %p390 = scmp.le.s32.totalorder 2, %s12
    // Predicated region
    $region49: #{transformer_encoder_layer.6} parent=5 // pred_check
      %p391 = pneg %p390
    $region50: #{transformer_encoder_layer.6} parent=5 // pred_check_branch
      %393 = sbr.rel (%p391) target = $region52
    $region51: #{transformer_encoder_layer.6} parent=5 // pred_region
      %s394 = ssub.s32 %s12, 2
      // Predicated region
      $region53: #{transformer_encoder_layer.6} parent=51 // pred_check
        %p395 = pneg %p177
      $region54: #{transformer_encoder_layer.6} parent=51 // pred_check_branch
        %397 = sbr.rel (%p395) target = $region56
      $region55: #{transformer_encoder_layer.6} parent=51 // pred_region
        %p398 = scmp.lt.s32.totalorder %s18, 1
        %s399 = scalar_select %p398, %s18, 1
        %s400 = smul.addr %s399, 8
        %s401 = scalar_lea.vmem %s6, %s400
      $region56: #{transformer_encoder_layer.6} parent=51 // pred_fallthru
        _
    $region52: #{transformer_encoder_layer.6} parent=5 // pred_fallthru
      _
  $region6: #{transformer_encoder_layer.6} parent=0 // loop_footer
    %s16 = sadd.s32 1, %s12
  $region7: #{transformer_encoder_layer.6} parent=0 // loop_footer_branch
    %11 = sbr.rel target = $region3
  $region8: #{transformer_encoder_layer.6} parent=0 // loop_exit
    _

// kernel: transformer_encoder_layer.5
$region0: #{transformer_encoder_layer.5}
  #allocation0 [shape = 'u32[]', space=smem, size = 0x4, offset = 0x4, fixed_abs, tag = 'smem constant byte address 0x4 - core index']
  #allocation1 [shape = 'u32[144,128]{1,0:T(1,128)}', space=vmem, size = 0x12000, scoped, tag = 'internal scratch']
  %s0 = inlined_call_operand.vmem [shape: f32[2,8,96], index: 0, kind: input, shape index: {}]
  %s1 = inlined_call_operand.vmem [shape: f32[2,8,32], index: 1, kind: output, shape index: {0}]
  %s2 = inlined_call_operand.hbm [shape: f32[2,4,8,8], index: 2, kind: output, shape index: {1}]
  %3 = xla_tuple %s1, %s2
  %s4 = sld [smem:[#allocation0]]
  $region45: #{transformer_encoder_layer.5} parent=0
    _
  %s6 = ssub.s32 1, %s4
  %s7 = scalar_select 0, %s6, %s4
  $region1: #{transformer_encoder_layer.5} parent=0
    #allocation2 [shape = 'u8[32768]{0}', space=vmem, size = 0x8000, scoped, tag = 'output window, operand 1']
    #allocation3 [shape = 's32[2]{0}', space=sflag, size = 0x8, scoped, tag = 'scoped memory for transformer_encoder_layer.5']
    %8 = vsyncpa [#allocation3], 0
    %s9 = scalar_lea.sflag [#allocation3], 1
    %10 = vsyncpa %s9, 0
    loop: start=0, step=1, limit=4
    $region2: #{transformer_encoder_layer.5} parent=1 // loop_pre_header
      _
    $region3: #{transformer_encoder_layer.5} parent=1 // loop_header
      %s12 = sphi 0, %s16
      %p13 = scmp.ge.s32.totalorder %s12, 4
      %s22 = sphi 0, %s24
      %s25 = sphi 0, %s22
      %s26 = sphi 0, %s25
      %s42 = sphi 0, %s26
      %s48 = sphi 0, %s50
      %s51 = sphi 0, %s48
      %s52 = sphi 0, %s51
      %s68 = sphi 0, %s52
      %s74 = sphi 0, %s76
      %s77 = sphi 0, %s74
      %s78 = sphi 0, %s77
      %s94 = sphi 0, %s78
    $region4: #{transformer_encoder_layer.5} parent=1 // loop_header_branch
      %15 = sbr.rel (%p13) target = $region8
    $region5: #{transformer_encoder_layer.5} parent=1 // loop_body
      %s17 = ssub.s32 %s12, 1
      %s18 = ssub.s32 %s12, 2
      %s19 = sadd.s32 %s12, 1
      %s20 = ssub.s32 %s12, %s19
      %p21 = scmp.eq.s32.totalorder %s20, 0
      %s23 = sadd.s32 %s22, 1
      %s24 = scalar_select %p21, %s22, %s23
      %p27 = pneg %p21
      %p28 = scmp.eq.s32.totalorder %s12, 1
      %p29 = por %p27, %p28
      %p30 = scmp.ne.s32.totalorder %s22, %s25
      %p31 = scmp.eq.s32.totalorder %s12, 0
      %p32 = por %p30, %p31
      %p33 = scmp.ne.s32.totalorder %s22, %s25
      %p34 = scmp.eq.s32.totalorder %s17, 1
      %p35 = por %p33, %p34
      %p36 = scmp.ne.s32.totalorder %s25, %s26
      %p37 = scmp.eq.s32.totalorder %s17, 0
      %p38 = por %p36, %p37
      %p39 = scmp.ne.s32.totalorder %s25, %s26
      %p40 = scmp.eq.s32.totalorder %s18, 1
      %p41 = por %p39, %p40
      %p43 = scmp.ne.s32.totalorder %s26, %s42
      %p44 = scmp.eq.s32.totalorder %s18, 0
      %p45 = por %p43, %p44
      %s46 = ssub.s32 %s12, %s19
      %p47 = scmp.eq.s32.totalorder %s46, 0
      %s49 = sadd.s32 %s48, 1
      %s50 = scalar_select %p47, %s48, %s49
      %p53 = pneg %p47
      %p54 = scmp.eq.s32.totalorder %s12, 1
      %p55 = por %p53, %p54
      %p56 = scmp.ne.s32.totalorder %s48, %s51
      %p57 = scmp.eq.s32.totalorder %s12, 0
      %p58 = por %p56, %p57
      %p59 = scmp.ne.s32.totalorder %s48, %s51
      %p60 = scmp.eq.s32.totalorder %s17, 1
      %p61 = por %p59, %p60
      %p62 = scmp.ne.s32.totalorder %s51, %s52
      %p63 = scmp.eq.s32.totalorder %s17, 0
      %p64 = por %p62, %p63
      %p65 = scmp.ne.s32.totalorder %s51, %s52
      %p66 = scmp.eq.s32.totalorder %s18, 1
      %p67 = por %p65, %p66
      %p69 = scmp.ne.s32.totalorder %s52, %s68
      %p70 = scmp.eq.s32.totalorder %s18, 0
      %p71 = por %p69, %p70
      %s72 = ssub.s32 %s12, %s19
      %p73 = scmp.eq.s32.totalorder %s72, 0
      %s75 = sadd.s32 %s74, 1
      %s76 = scalar_select %p73, %s74, %s75
      %p79 = pneg %p73
      %p80 = scmp.eq.s32.totalorder %s12, 1
      %p81 = por %p79, %p80
      %p82 = scmp.ne.s32.totalorder %s74, %s77
      %p83 = scmp.eq.s32.totalorder %s12, 0
      %p84 = por %p82, %p83
      %p85 = scmp.ne.s32.totalorder %s74, %s77
      %p86 = scmp.eq.s32.totalorder %s17, 1
      %p87 = por %p85, %p86
      %p88 = scmp.ne.s32.totalorder %s77, %s78
      %p89 = scmp.eq.s32.totalorder %s17, 0
      %p90 = por %p88, %p89
      %p91 = scmp.ne.s32.totalorder %s77, %s78
      %p92 = scmp.eq.s32.totalorder %s18, 1
      %p93 = por %p91, %p92
      %p95 = scmp.ne.s32.totalorder %s78, %s94
      %p96 = scmp.eq.s32.totalorder %s18, 0
      %p97 = por %p95, %p96
      %p98 = scmp.le.s32.totalorder 1, %s12
      %p99 = scmp.lt.s32.totalorder %s12, 3
      %p100 = pnand %p98, %p99
      %p101 = pneg %p100
      // Predicated region
      $region9: #{transformer_encoder_layer.5} parent=5 // pred_check
        _
      $region10: #{transformer_encoder_layer.5} parent=5 // pred_check_branch
        %103 = sbr.rel (%p100) target = $region12
      $region11: #{transformer_encoder_layer.5} parent=5 // pred_region
        %s104 = ssub.s32 %s12, 1
      $region12: #{transformer_encoder_layer.5} parent=5 // pred_fallthru
        _
      %p105 = scmp.lt.s32.totalorder %s12, 2
      // Predicated region
      $region13: #{transformer_encoder_layer.5} parent=5 // pred_check
        %p106 = pneg %p105
      $region14: #{transformer_encoder_layer.5} parent=5 // pred_check_branch
        %108 = sbr.rel (%p106) target = $region16
      $region15: #{transformer_encoder_layer.5} parent=5 // pred_region
        // Predicated region
        $region17: #{transformer_encoder_layer.5} parent=15 // pred_check
          %p109 = pneg %p32
        $region18: #{transformer_encoder_layer.5} parent=15 // pred_check_branch
          %111 = sbr.rel (%p109) target = $region20
        $region19: #{transformer_encoder_layer.5} parent=15 // pred_region
          %p112 = scmp.lt.s32.totalorder %s12, 1
          %s113 = scalar_select %p112, %s12, 1
          %s114 = smul.addr %s113, 8
          %s115 = scalar_lea.vmem %s0, %s114
        $region20: #{transformer_encoder_layer.5} parent=15 // pred_fallthru
          _
      $region16: #{transformer_encoder_layer.5} parent=5 // pred_fallthru
        _
      %p116 = scmp.le.s32.totalorder 1, %s12
      %p117 = scmp.lt.s32.totalorder %s12, 3
      %p118 = pnand %p116, %p117
      %p119 = pneg %p118
      // Predicated region
      $region21: #{transformer_encoder_layer.5} parent=5 // pred_check
        _
      $region22: #{transformer_encoder_layer.5} parent=5 // pred_check_branch
        %121 = sbr.rel (%p118) target = $region24
      $region23: #{transformer_encoder_layer.5} parent=5 // pred_region
        %s122 = ssub.s32 %s12, 1
        %p123 = scmp.lt.s32.totalorder %s17, 1
        %s124 = scalar_select %p123, %s17, 1
        %s125 = smul.addr %s124, 8
        %s126 = scalar_lea.vmem %s0, %s125
        %p127 = pneg %p38
        %p128 = pneg %p35
        %p129 = pneg %p64
        %p130 = pneg %p61
        %p131 = scmp.lt.s32.totalorder %s17, 1
        %s132 = scalar_select %p131, %s17, 1
        %s133 = smul.addr %s132, 8
        %s134 = scalar_lea.vmem %s1, %s133
        %p135 = pneg %p90
        %p136 = pneg %p87
        %s137 = sand.u32 %s77, 1
        %s138 = scalar_lea.sflag [#allocation3], %s137
        %s139 = sand.u32 %s77, 1
        %s140 = smul.addr %s139, 32
        %s141 = scalar_lea.vmem [#allocation2], %s140
        %p142 = scmp.lt.s32.totalorder %s17, 1
        %s143 = scalar_select %p142, %s17, 1
        %s144 = smul.addr %s143, 8
        %s145 = scalar_lea.vmem %s0, %s144
        %p146 = scmp.lt.s32.totalorder %s17, 1
        %s147 = scalar_select %p146, %s17, 1
        %s148 = smul.addr %s147, 8
        %s149 = scalar_lea.vmem %s1, %s148
        %v150 = vld [vmem:[%s145] sm:$0xff]
        %152 = vrot.lane.b32.xlu0 %v150, 96
        %v153 = vpop.permute.xlu0 %152
        %vm154 = vcmask 64512
        %v155 = vsel %vm154, %v150, 0
        %v157 = vsel %vm154, %v153, 0
        %159 = vmatprep.subr.mxu0 0.0
        %160 = vmatpush1.xpose.msra.mxu0 %v157
        %161 = vmatprep.subr.mxu0 0.0
        %162 = vmatpush1.xpose.msra.mxu0 0.0
        %163 = vmatprep.subr.mxu0 0.0
        %164 = vmatpush1.xpose.msra.mxu0 0.0
        %165 = vmatprep.subr.mxu0 0.0
        %166 = vmatpush1.xpose.msra.mxu0 0.0
        %167 = vmatprep.subr.mxu0 0.0
        %168 = vmatpush1.xpose.msra.mxu0 0.0
        %169 = vmatprep.subr.mxu0 0.0
        %170 = vmatpush1.xpose.msra.mxu0 0.0
        %171 = vmatprep.subr.mxu0 0.0
        %172 = vmatpush1.xpose.msra.mxu0 0.0
        %173 = vmatprep.subr.mxu0 0.0
        %174 = vmatpush1.xpose.msra.mxu0 0.0
        %175 = vmatprep.subr.mxu0 0.0
        %176 = vmatpush1.xpose.msra.mxu0 0.0
        %177 = vmatprep.subr.mxu0 0.0
        %178 = vmatpush1.xpose.msra.mxu0 0.0
        %179 = vmatprep.subr.mxu0 0.0
        %180 = vmatpush1.xpose.msra.mxu0 0.0
        %181 = vmatprep.subr.mxu0 0.0
        %182 = vmatpush1.xpose.msra.mxu0 0.0
        %183 = vmatprep.subr.mxu0 0.0
        %184 = vmatpush1.xpose.msra.mxu0 0.0
        %185 = vmatprep.subr.mxu0 0.0
        %186 = vmatpush1.xpose.msra.mxu0 0.0
        %187 = vmatprep.subr.mxu0 0.0
        %188 = vmatpush1.xpose.msra.mxu0 0.0
        %189 = vmatprep.subr.mxu0 0.0
        %190 = vmatpush1.xpose.msra.mxu0 0.0
        %191 = vmatprep.subr.mxu0 0.0
        %192 = vmatpush1.xpose.msra.mxu0 0.0
        %193 = vmatprep.subr.mxu0 0.0
        %194 = vmatpush1.xpose.msra.mxu0 0.0
        %195 = vmatprep.subr.mxu0 0.0
        %196 = vmatpush1.xpose.msra.mxu0 0.0
        %197 = vmatprep.subr.mxu0 0.0
        %198 = vmatpush1.xpose.msra.mxu0 0.0
        %199 = vmatprep.subr.mxu0 0.0
        %200 = vmatpush1.xpose.msra.mxu0 0.0
        %201 = vmatprep.subr.mxu0 0.0
        %202 = vmatpush1.xpose.msra.mxu0 0.0
        %203 = vmatprep.subr.mxu0 0.0
        %204 = vmatpush1.xpose.msra.mxu0 0.0
        %205 = vmatprep.subr.mxu0 0.0
        %206 = vmatpush1.xpose.msra.mxu0 0.0
        %207 = vmatprep.subr.mxu0 0.0
        %208 = vmatpush1.xpose.msra.mxu0 0.0
        %209 = vmatprep.subr.mxu0 0.0
        %210 = vmatpush1.xpose.msra.mxu0 0.0
        %211 = vmatprep.subr.mxu0 0.0
        %212 = vmatpush1.xpose.msra.mxu0 0.0
        %213 = vmatprep.subr.mxu0 0.0
        %214 = vmatpush1.xpose.msra.mxu0 0.0
        %215 = vmatprep.subr.mxu0 0.0
        %216 = vmatpush1.xpose.msra.mxu0 0.0
        %217 = vmatprep.subr.mxu0 0.0
        %218 = vmatpush1.xpose.msra.mxu0 0.0
        %219 = vmatprep.subr.mxu0 0.0
        %220 = vmatpush1.xpose.msra.mxu0 0.0
        %221 = vmatprep.subr.mxu0 0.0
        %222 = vmatpush1.xpose.msra.mxu0 0.0
        %223 = vmatprep.mubr.f32.mxu0 0.0
        %224 = vmatmul.mubr.f32.gmra.mrb[0].mxu0 %v155
        %v225 = vpop.f32.mrb[0].mxu0
        %v226 = vadd.f32 0.0, %v225
        %v227 = vpop.f32.mrb[0].mxu0
        %228 = vdwg.mxu0
        %v229 = vmul.f32 %v226, 0.35355338
        %v230 = vsel %vm154, %v229, -inf
        %231 = vmax.xlane.f32.xlu0 %v230
        %v232 = vpop.xlane.xlu0 %231
        %v233 = vsub.f32 %v229, %v232
        %v234 = vmul.f32 %v233, 1.442695
        %v235 = vpow.pop %v234
        %v236 = vsel %vm154, %v235, 0.0
        %237 = vadd.xlane.f32.xlu0 %v236
        %v238 = vpop.xlane.xlu0 %237
        %v239 = vrcp.pop %v238
        %v240 = vmul.f32 %v235, %v239
        %241 = vst.msk [vmem:[%s141] sm:$0xff] %vm154, %v240
        %242 = vrot.lane.b32.xlu0 %v150, 64
        %v243 = vpop.permute.xlu0 %242
        %v246 = vsel %vm154, %v240, 0
        %248 = vmatprep.subr.mxu0 0.0
        %249 = vmatpush1.msra.mxu0 %v243
        %250 = vmatprep.subr.mxu0 0.0
        %251 = vmatpush1.msra.mxu0 0.0
        %252 = vmatprep.subr.mxu0 0.0
        %253 = vmatpush1.msra.mxu0 0.0
        %254 = vmatprep.subr.mxu0 0.0
        %255 = vmatpush1.msra.mxu0 0.0
        %256 = vmatprep.subr.mxu0 0.0
        %257 = vmatpush1.msra.mxu0 0.0
        %258 = vmatprep.subr.mxu0 0.0
        %259 = vmatpush1.msra.mxu0 0.0
        %260 = vmatprep.subr.mxu0 0.0
        %261 = vmatpush1.msra.mxu0 0.0
        %262 = vmatprep.subr.mxu0 0.0
        %263 = vmatpush1.msra.mxu0 0.0
        %264 = vmatprep.subr.mxu0 0.0
        %265 = vmatpush1.msra.mxu0 0.0
        %266 = vmatprep.subr.mxu0 0.0
        %267 = vmatpush1.msra.mxu0 0.0
        %268 = vmatprep.subr.mxu0 0.0
        %269 = vmatpush1.msra.mxu0 0.0
        %270 = vmatprep.subr.mxu0 0.0
        %271 = vmatpush1.msra.mxu0 0.0
        %272 = vmatprep.subr.mxu0 0.0
        %273 = vmatpush1.msra.mxu0 0.0
        %274 = vmatprep.subr.mxu0 0.0
        %275 = vmatpush1.msra.mxu0 0.0
        %276 = vmatprep.subr.mxu0 0.0
        %277 = vmatpush1.msra.mxu0 0.0
        %278 = vmatprep.subr.mxu0 0.0
        %279 = vmatpush1.msra.mxu0 0.0
        %280 = vmatprep.subr.mxu0 0.0
        %281 = vmatpush1.msra.mxu0 0.0
        %282 = vmatprep.subr.mxu0 0.0
        %283 = vmatpush1.msra.mxu0 0.0
        %284 = vmatprep.subr.mxu0 0.0
        %285 = vmatpush1.msra.mxu0 0.0
        %286 = vmatprep.subr.mxu0 0.0
        %287 = vmatpush1.msra.mxu0 0.0
        %288 = vmatprep.subr.mxu0 0.0
        %289 = vmatpush1.msra.mxu0 0.0
        %290 = vmatprep.subr.mxu0 0.0
        %291 = vmatpush1.msra.mxu0 0.0
        %292 = vmatprep.subr.mxu0 0.0
        %293 = vmatpush1.msra.mxu0 0.0
        %294 = vmatprep.subr.mxu0 0.0
        %295 = vmatpush1.msra.mxu0 0.0
        %296 = vmatprep.subr.mxu0 0.0
        %297 = vmatpush1.msra.mxu0 0.0
        %298 = vmatprep.subr.mxu0 0.0
        %299 = vmatpush1.msra.mxu0 0.0
        %300 = vmatprep.subr.mxu0 0.0
        %301 = vmatpush1.msra.mxu0 0.0
        %302 = vmatprep.subr.mxu0 0.0
        %303 = vmatpush1.msra.mxu0 0.0
        %304 = vmatprep.subr.mxu0 0.0
        %305 = vmatpush1.msra.mxu0 0.0
        %306 = vmatprep.subr.mxu0 0.0
        %307 = vmatpush1.msra.mxu0 0.0
        %308 = vmatprep.subr.mxu0 0.0
        %309 = vmatpush1.msra.mxu0 0.0
        %310 = vmatprep.subr.mxu0 0.0
        %311 = vmatpush1.msra.mxu0 0.0
        %312 = vmatprep.mubr.f32.mxu0 0.0
        %313 = vmatmul.mubr.f32.gmra.mrb[0].mxu0 %v246
        %v314 = vpop.f32.mrb[0].mxu0
        %v315 = vadd.f32 0.0, %v314
        %v316 = vpop.f32.mrb[0].mxu0
        %317 = vdwg.mxu0
        %318 = vrot.lane.b32.xlu0 %v150, 120
        %v319 = vpop.permute.xlu0 %318
        %320 = vrot.lane.b32.xlu0 %v150, 88
        %v321 = vpop.permute.xlu0 %320
        %v322 = vsel %vm154, %v319, 0
        %v324 = vsel %vm154, %v321, 0
        %326 = vmatprep.subr.mxu0 0.0
        %327 = vmatpush1.xpose.msra.mxu0 %v324
        %328 = vmatprep.subr.mxu0 0.0
        %329 = vmatpush1.xpose.msra.mxu0 0.0
        %330 = vmatprep.subr.mxu0 0.0
        %331 = vmatpush1.xpose.msra.mxu0 0.0
        %332 = vmatprep.subr.mxu0 0.0
        %333 = vmatpush1.xpose.msra.mxu0 0.0
        %334 = vmatprep.subr.mxu0 0.0
        %335 = vmatpush1.xpose.msra.mxu0 0.0
        %336 = vmatprep.subr.mxu0 0.0
        %337 = vmatpush1.xpose.msra.mxu0 0.0
        %338 = vmatprep.subr.mxu0 0.0
        %339 = vmatpush1.xpose.msra.mxu0 0.0
        %340 = vmatprep.subr.mxu0 0.0
        %341 = vmatpush1.xpose.msra.mxu0 0.0
        %342 = vmatprep.subr.mxu0 0.0
        %343 = vmatpush1.xpose.msra.mxu0 0.0
        %344 = vmatprep.subr.mxu0 0.0
        %345 = vmatpush1.xpose.msra.mxu0 0.0
        %346 = vmatprep.subr.mxu0 0.0
        %347 = vmatpush1.xpose.msra.mxu0 0.0
        %348 = vmatprep.subr.mxu0 0.0
        %349 = vmatpush1.xpose.msra.mxu0 0.0
        %350 = vmatprep.subr.mxu0 0.0
        %351 = vmatpush1.xpose.msra.mxu0 0.0
        %352 = vmatprep.subr.mxu0 0.0
        %353 = vmatpush1.xpose.msra.mxu0 0.0
        %354 = vmatprep.subr.mxu0 0.0
        %355 = vmatpush1.xpose.msra.mxu0 0.0
        %356 = vmatprep.subr.mxu0 0.0
        %357 = vmatpush1.xpose.msra.mxu0 0.0
        %358 = vmatprep.subr.mxu0 0.0
        %359 = vmatpush1.xpose.msra.mxu0 0.0
        %360 = vmatprep.subr.mxu0 0.0
        %361 = vmatpush1.xpose.msra.mxu0 0.0
        %362 = vmatprep.subr.mxu0 0.0
        %363 = vmatpush1.xpose.msra.mxu0 0.0
        %364 = vmatprep.subr.mxu0 0.0
        %365 = vmatpush1.xpose.msra.mxu0 0.0
        %366 = vmatprep.subr.mxu0 0.0
        %367 = vmatpush1.xpose.msra.mxu0 0.0
        %368 = vmatprep.subr.mxu0 0.0
        %369 = vmatpush1.xpose.msra.mxu0 0.0
        %370 = vmatprep.subr.mxu0 0.0
        %371 = vmatpush1.xpose.msra.mxu0 0.0
        %372 = vmatprep.subr.mxu0 0.0
        %373 = vmatpush1.xpose.msra.mxu0 0.0
        %374 = vmatprep.subr.mxu0 0.0
        %375 = vmatpush1.xpose.msra.mxu0 0.0
        %376 = vmatprep.subr.mxu0 0.0
        %377 = vmatpush1.xpose.msra.mxu0 0.0
        %378 = vmatprep.subr.mxu0 0.0
        %379 = vmatpush1.xpose.msra.mxu0 0.0
        %380 = vmatprep.subr.mxu0 0.0
        %381 = vmatpush1.xpose.msra.mxu0 0.0
        %382 = vmatprep.subr.mxu0 0.0
        %383 = vmatpush1.xpose.msra.mxu0 0.0
        %384 = vmatprep.subr.mxu0 0.0
        %385 = vmatpush1.xpose.msra.mxu0 0.0
        %386 = vmatprep.subr.mxu0 0.0
        %387 = vmatpush1.xpose.msra.mxu0 0.0
        %388 = vmatprep.subr.mxu0 0.0
        %389 = vmatpush1.xpose.msra.mxu0 0.0
        %390 = vmatprep.mubr.f32.mxu0 0.0
        %391 = vmatmul.mubr.f32.gmra.mrb[0].mxu0 %v322
        %v392 = vpop.f32.mrb[0].mxu0
        %v393 = vadd.f32 0.0, %v392
        %v394 = vpop.f32.mrb[0].mxu0
        %395 = vdwg.mxu0
        %v396 = vmul.f32 %v393, 0.35355338
        %v397 = vsel %vm154, %v396, -inf
        %398 = vmax.xlane.f32.xlu0 %v397
        %v399 = vpop.xlane.xlu0 %398
        %v400 = vsub.f32 %v396, %v399
        %v401 = vmul.f32 %v400, 1.442695
        %v402 = vpow.pop %v401
        %v403 = vsel %vm154, %v402, 0.0
        %404 = vadd.xlane.f32.xlu0 %v403
        %v405 = vpop.xlane.xlu0 %404
        %v406 = vrcp.pop %v405
        %v407 = vmul.f32 %v402, %v406
        %s408 = scalar_lea.vmem %s141, 8 [#allocation2]
        %409 = vst.msk [vmem:[%s408] sm:$0xff] %vm154, %v407
        %410 = vrot.lane.b32.xlu0 %v150, 56
        %v411 = vpop.permute.xlu0 %410
        %v414 = vsel %vm154, %v407, 0
        %416 = vmatprep.subr.mxu0 0.0
        %417 = vmatpush1.msra.mxu0 %v411
        %418 = vmatprep.subr.mxu0 0.0
        %419 = vmatpush1.msra.mxu0 0.0
        %420 = vmatprep.subr.mxu0 0.0
        %421 = vmatpush1.msra.mxu0 0.0
        %422 = vmatprep.subr.mxu0 0.0
        %423 = vmatpush1.msra.mxu0 0.0
        %424 = vmatprep.subr.mxu0 0.0
        %425 = vmatpush1.msra.mxu0 0.0
        %426 = vmatprep.subr.mxu0 0.0
        %427 = vmatpush1.msra.mxu0 0.0
        %428 = vmatprep.subr.mxu0 0.0
        %429 = vmatpush1.msra.mxu0 0.0
        %430 = vmatprep.subr.mxu0 0.0
        %431 = vmatpush1.msra.mxu0 0.0
        %432 = vmatprep.subr.mxu0 0.0
        %433 = vmatpush1.msra.mxu0 0.0
        %434 = vmatprep.subr.mxu0 0.0
        %435 = vmatpush1.msra.mxu0 0.0
        %436 = vmatprep.subr.mxu0 0.0
        %437 = vmatpush1.msra.mxu0 0.0
        %438 = vmatprep.subr.mxu0 0.0
        %439 = vmatpush1.msra.mxu0 0.0
        %440 = vmatprep.subr.mxu0 0.0
        %441 = vmatpush1.msra.mxu0 0.0
        %442 = vmatprep.subr.mxu0 0.0
        %443 = vmatpush1.msra.mxu0 0.0
        %444 = vmatprep.subr.mxu0 0.0
        %445 = vmatpush1.msra.mxu0 0.0
        %446 = vmatprep.subr.mxu0 0.0
        %447 = vmatpush1.msra.mxu0 0.0
        %448 = vmatprep.subr.mxu0 0.0
        %449 = vmatpush1.msra.mxu0 0.0
        %450 = vmatprep.subr.mxu0 0.0
        %451 = vmatpush1.msra.mxu0 0.0
        %452 = vmatprep.subr.mxu0 0.0
        %453 = vmatpush1.msra.mxu0 0.0
        %454 = vmatprep.subr.mxu0 0.0
        %455 = vmatpush1.msra.mxu0 0.0
        %456 = vmatprep.subr.mxu0 0.0
        %457 = vmatpush1.msra.mxu0 0.0
        %458 = vmatprep.subr.mxu0 0.0
        %459 = vmatpush1.msra.mxu0 0.0
        %460 = vmatprep.subr.mxu0 0.0
        %461 = vmatpush1.msra.mxu0 0.0
        %462 = vmatprep.subr.mxu0 0.0
        %463 = vmatpush1.msra.mxu0 0.0
        %464 = vmatprep.subr.mxu0 0.0
        %465 = vmatpush1.msra.mxu0 0.0
        %466 = vmatprep.subr.mxu0 0.0
        %467 = vmatpush1.msra.mxu0 0.0
        %468 = vmatprep.subr.mxu0 0.0
        %469 = vmatpush1.msra.mxu0 0.0
        %470 = vmatprep.subr.mxu0 0.0
        %471 = vmatpush1.msra.mxu0 0.0
        %472 = vmatprep.subr.mxu0 0.0
        %473 = vmatpush1.msra.mxu0 0.0
        %474 = vmatprep.subr.mxu0 0.0
        %475 = vmatpush1.msra.mxu0 0.0
        %476 = vmatprep.subr.mxu0 0.0
        %477 = vmatpush1.msra.mxu0 0.0
        %478 = vmatprep.subr.mxu0 0.0
        %479 = vmatpush1.msra.mxu0 0.0
        %480 = vmatprep.mubr.f32.mxu0 0.0
        %481 = vmatmul.mubr.f32.gmra.mrb[0].mxu0 %v414
        %v482 = vpop.f32.mrb[0].mxu0
        %v483 = vadd.f32 0.0, %v482
        %v484 = vpop.f32.mrb[0].mxu0
        %485 = vdwg.mxu0
        %486 = vrot.lane.b32.xlu0 %v150, 112
        %v487 = vpop.permute.xlu0 %486
        %488 = vrot.lane.b32.xlu0 %v150, 80
        %v489 = vpop.permute.xlu0 %488
        %v490 = vsel %vm154, %v487, 0
        %v492 = vsel %vm154, %v489, 0
        %494 = vmatprep.subr.mxu0 0.0
        %495 = vmatpush1.xpose.msra.mxu0 %v492
        %496 = vmatprep.subr.mxu0 0.0
        %497 = vmatpush1.xpose.msra.mxu0 0.0
        %498 = vmatprep.subr.mxu0 0.0
        %499 = vmatpush1.xpose.msra.mxu0 0.0
        %500 = vmatprep.subr.mxu0 0.0
        %501 = vmatpush1.xpose.msra.mxu0 0.0
        %502 = vmatprep.subr.mxu0 0.0
        %503 = vmatpush1.xpose.msra.mxu0 0.0
        %504 = vmatprep.subr.mxu0 0.0
        %505 = vmatpush1.xpose.msra.mxu0 0.0
        %506 = vmatprep.subr.mxu0 0.0
        %507 = vmatpush1.xpose.msra.mxu0 0.0
        %508 = vmatprep.subr.mxu0 0.0
        %509 = vmatpush1.xpose.msra.mxu0 0.0
        %510 = vmatprep.subr.mxu0 0.0
        %511 = vmatpush1.xpose.msra.mxu0 0.0
        %512 = vmatprep.subr.mxu0 0.0
        %513 = vmatpush1.xpose.msra.mxu0 0.0
        %514 = vmatprep.subr.mxu0 0.0
        %515 = vmatpush1.xpose.msra.mxu0 0.0
        %516 = vmatprep.subr.mxu0 0.0
        %517 = vmatpush1.xpose.msra.mxu0 0.0
        %518 = vmatprep.subr.mxu0 0.0
        %519 = vmatpush1.xpose.msra.mxu0 0.0
        %520 = vmatprep.subr.mxu0 0.0
        %521 = vmatpush1.xpose.msra.mxu0 0.0
        %522 = vmatprep.subr.mxu0 0.0
        %523 = vmatpush1.xpose.msra.mxu0 0.0
        %524 = vmatprep.subr.mxu0 0.0
        %525 = vmatpush1.xpose.msra.mxu0 0.0
        %526 = vmatprep.subr.mxu0 0.0
        %527 = vmatpush1.xpose.msra.mxu0 0.0
        %528 = vmatprep.subr.mxu0 0.0
        %529 = vmatpush1.xpose.msra.mxu0 0.0
        %530 = vmatprep.subr.mxu0 0.0
        %531 = vmatpush1.xpose.msra.mxu0 0.0
        %532 = vmatprep.subr.mxu0 0.0
        %533 = vmatpush1.xpose.msra.mxu0 0.0
        %534 = vmatprep.subr.mxu0 0.0
        %535 = vmatpush1.xpose.msra.mxu0 0.0
        %536 = vmatprep.subr.mxu0 0.0
        %537 = vmatpush1.xpose.msra.mxu0 0.0
        %538 = vmatprep.subr.mxu0 0.0
        %539 = vmatpush1.xpose.msra.mxu0 0.0
        %540 = vmatprep.subr.mxu0 0.0
        %541 = vmatpush1.xpose.msra.mxu0 0.0
        %542 = vmatprep.subr.mxu0 0.0
        %543 = vmatpush1.xpose.msra.mxu0 0.0
        %544 = vmatprep.subr.mxu0 0.0
        %545 = vmatpush1.xpose.msra.mxu0 0.0
        %546 = vmatprep.subr.mxu0 0.0
        %547 = vmatpush1.xpose.msra.mxu0 0.0
        %548 = vmatprep.subr.mxu0 0.0
        %549 = vmatpush1.xpose.msra.mxu0 0.0
        %550 = vmatprep.subr.mxu0 0.0
        %551 = vmatpush1.xpose.msra.mxu0 0.0
        %552 = vmatprep.subr.mxu0 0.0
        %553 = vmatpush1.xpose.msra.mxu0 0.0
        %554 = vmatprep.subr.mxu0 0.0
        %555 = vmatpush1.xpose.msra.mxu0 0.0
        %556 = vmatprep.subr.mxu0 0.0
        %557 = vmatpush1.xpose.msra.mxu0 0.0
        %558 = vmatprep.mubr.f32.mxu0 0.0
        %559 = vmatmul.mubr.f32.gmra.mrb[0].mxu0 %v490
        %v560 = vpop.f32.mrb[0].mxu0
        %v561 = vadd.f32 0.0, %v560
        %v562 = vpop.f32.mrb[0].mxu0
        %563 = vdwg.mxu0
        %v564 = vmul.f32 %v561, 0.35355338
        %v565 = vsel %vm154, %v564, -inf
        %566 = vmax.xlane.f32.xlu0 %v565
        %v567 = vpop.xlane.xlu0 %566
        %v568 = vsub.f32 %v564, %v567
        %v569 = vmul.f32 %v568, 1.442695
        %v570 = vpow.pop %v569
        %v571 = vsel %vm154, %v570, 0.0
        %572 = vadd.xlane.f32.xlu0 %v571
        %v573 = vpop.xlane.xlu0 %572
        %v574 = vrcp.pop %v573
        %v575 = vmul.f32 %v570, %v574
        %s576 = scalar_lea.vmem %s141, 16 [#allocation2]
        %577 = vst.msk [vmem:[%s576] sm:$0xff] %vm154, %v575
        %578 = vrot.lane.b32.xlu0 %v150, 48
        %v579 = vpop.permute.xlu0 %578
        %v582 = vsel %vm154, %v575, 0
        %584 = vmatprep.subr.mxu0 0.0
        %585 = vmatpush1.msra.mxu0 %v579
        %586 = vmatprep.subr.mxu0 0.0
        %587 = vmatpush1.msra.mxu0 0.0
        %588 = vmatprep.subr.mxu0 0.0
        %589 = vmatpush1.msra.mxu0 0.0
        %590 = vmatprep.subr.mxu0 0.0
        %591 = vmatpush1.msra.mxu0 0.0
        %592 = vmatprep.subr.mxu0 0.0
        %593 = vmatpush1.msra.mxu0 0.0
        %594 = vmatprep.subr.mxu0 0.0
        %595 = vmatpush1.msra.mxu0 0.0
        %596 = vmatprep.subr.mxu0 0.0
        %597 = vmatpush1.msra.mxu0 0.0
        %598 = vmatprep.subr.mxu0 0.0
        %599 = vmatpush1.msra.mxu0 0.0
        %600 = vmatprep.subr.mxu0 0.0
        %601 = vmatpush1.msra.mxu0 0.0
        %602 = vmatprep.subr.mxu0 0.0
        %603 = vmatpush1.msra.mxu0 0.0
        %604 = vmatprep.subr.mxu0 0.0
        %605 = vmatpush1.msra.mxu0 0.0
        %606 = vmatprep.subr.mxu0 0.0
        %607 = vmatpush1.msra.mxu0 0.0
        %608 = vmatprep.subr.mxu0 0.0
        %609 = vmatpush1.msra.mxu0 0.0
        %610 = vmatprep.subr.mxu0 0.0
        %611 = vmatpush1.msra.mxu0 0.0
        %612 = vmatprep.subr.mxu0 0.0
        %613 = vmatpush1.msra.mxu0 0.0
        %614 = vmatprep.subr.mxu0 0.0
        %615 = vmatpush1.msra.mxu0 0.0
        %616 = vmatprep.subr.mxu0 0.0
        %617 = vmatpush1.msra.mxu0 0.0
        %618 = vmatprep.subr.mxu0 0.0
        %619 = vmatpush1.msra.mxu0 0.0
        %620 = vmatprep.subr.mxu0 0.0
        %621 = vmatpush1.msra.mxu0 0.0
        %622 = vmatprep.subr.mxu0 0.0
        %623 = vmatpush1.msra.mxu0 0.0
        %624 = vmatprep.subr.mxu0 0.0
        %625 = vmatpush1.msra.mxu0 0.0
        %626 = vmatprep.subr.mxu0 0.0
        %627 = vmatpush1.msra.mxu0 0.0
        %628 = vmatprep.subr.mxu0 0.0
        %629 = vmatpush1.msra.mxu0 0.0
        %630 = vmatprep.subr.mxu0 0.0
        %631 = vmatpush1.msra.mxu0 0.0
        %632 = vmatprep.subr.mxu0 0.0
        %633 = vmatpush1.msra.mxu0 0.0
        %634 = vmatprep.subr.mxu0 0.0
        %635 = vmatpush1.msra.mxu0 0.0
        %636 = vmatprep.subr.mxu0 0.0
        %637 = vmatpush1.msra.mxu0 0.0
        %638 = vmatprep.subr.mxu0 0.0
        %639 = vmatpush1.msra.mxu0 0.0
        %640 = vmatprep.subr.mxu0 0.0
        %641 = vmatpush1.msra.mxu0 0.0
        %642 = vmatprep.subr.mxu0 0.0
        %643 = vmatpush1.msra.mxu0 0.0
        %644 = vmatprep.subr.mxu0 0.0
        %645 = vmatpush1.msra.mxu0 0.0
        %646 = vmatprep.subr.mxu0 0.0
        %647 = vmatpush1.msra.mxu0 0.0
        %648 = vmatprep.mubr.f32.mxu0 0.0
        %649 = vmatmul.mubr.f32.gmra.mrb[0].mxu0 %v582
        %v650 = vpop.f32.mrb[0].mxu0
        %v651 = vadd.f32 0.0, %v650
        %v652 = vpop.f32.mrb[0].mxu0
        %653 = vdwg.mxu0
        %654 = vrot.lane.b32.xlu0 %v150, 104
        %v655 = vpop.permute.xlu0 %654
        %656 = vrot.lane.b32.xlu0 %v150, 72
        %v657 = vpop.permute.xlu0 %656
        %v658 = vsel %vm154, %v655, 0
        %v660 = vsel %vm154, %v657, 0
        %662 = vmatprep.subr.mxu0 0.0
        %663 = vmatpush1.xpose.msra.mxu0 %v660
        %664 = vmatprep.subr.mxu0 0.0
        %665 = vmatpush1.xpose.msra.mxu0 0.0
        %666 = vmatprep.subr.mxu0 0.0
        %667 = vmatpush1.xpose.msra.mxu0 0.0
        %668 = vmatprep.subr.mxu0 0.0
        %669 = vmatpush1.xpose.msra.mxu0 0.0
        %670 = vmatprep.subr.mxu0 0.0
        %671 = vmatpush1.xpose.msra.mxu0 0.0
        %672 = vmatprep.subr.mxu0 0.0
        %673 = vmatpush1.xpose.msra.mxu0 0.0
        %674 = vmatprep.subr.mxu0 0.0
        %675 = vmatpush1.xpose.msra.mxu0 0.0
        %676 = vmatprep.subr.mxu0 0.0
        %677 = vmatpush1.xpose.msra.mxu0 0.0
        %678 = vmatprep.subr.mxu0 0.0
        %679 = vmatpush1.xpose.msra.mxu0 0.0
        %680 = vmatprep.subr.mxu0 0.0
        %681 = vmatpush1.xpose.msra.mxu0 0.0
        %682 = vmatprep.subr.mxu0 0.0
        %683 = vmatpush1.xpose.msra.mxu0 0.0
        %684 = vmatprep.subr.mxu0 0.0
        %685 = vmatpush1.xpose.msra.mxu0 0.0
        %686 = vmatprep.subr.mxu0 0.0
        %687 = vmatpush1.xpose.msra.mxu0 0.0
        %688 = vmatprep.subr.mxu0 0.0
        %689 = vmatpush1.xpose.msra.mxu0 0.0
        %690 = vmatprep.subr.mxu0 0.0
        %691 = vmatpush1.xpose.msra.mxu0 0.0
        %692 = vmatprep.subr.mxu0 0.0
        %693 = vmatpush1.xpose.msra.mxu0 0.0
        %694 = vmatprep.subr.mxu0 0.0
        %695 = vmatpush1.xpose.msra.mxu0 0.0
        %696 = vmatprep.subr.mxu0 0.0
        %697 = vmatpush1.xpose.msra.mxu0 0.0
        %698 = vmatprep.subr.mxu0 0.0
        %699 = vmatpush1.xpose.msra.mxu0 0.0
        %700 = vmatprep.subr.mxu0 0.0
        %701 = vmatpush1.xpose.msra.mxu0 0.0
        %702 = vmatprep.subr.mxu0 0.0
        %703 = vmatpush1.xpose.msra.mxu0 0.0
        %704 = vmatprep.subr.mxu0 0.0
        %705 = vmatpush1.xpose.msra.mxu0 0.0
        %706 = vmatprep.subr.mxu0 0.0
        %707 = vmatpush1.xpose.msra.mxu0 0.0
        %708 = vmatprep.subr.mxu0 0.0
        %709 = vmatpush1.xpose.msra.mxu0 0.0
        %710 = vmatprep.subr.mxu0 0.0
        %711 = vmatpush1.xpose.msra.mxu0 0.0
        %712 = vmatprep.subr.mxu0 0.0
        %713 = vmatpush1.xpose.msra.mxu0 0.0
        %714 = vmatprep.subr.mxu0 0.0
        %715 = vmatpush1.xpose.msra.mxu0 0.0
        %716 = vmatprep.subr.mxu0 0.0
        %717 = vmatpush1.xpose.msra.mxu0 0.0
        %718 = vmatprep.subr.mxu0 0.0
        %719 = vmatpush1.xpose.msra.mxu0 0.0
        %720 = vmatprep.subr.mxu0 0.0
        %721 = vmatpush1.xpose.msra.mxu0 0.0
        %722 = vmatprep.subr.mxu0 0.0
        %723 = vmatpush1.xpose.msra.mxu0 0.0
        %724 = vmatprep.subr.mxu0 0.0
        %725 = vmatpush1.xpose.msra.mxu0 0.0
        %726 = vmatprep.mubr.f32.mxu0 0.0
        %727 = vmatmul.mubr.f32.gmra.mrb[0].mxu0 %v658
        %v728 = vpop.f32.mrb[0].mxu0
        %v729 = vadd.f32 0.0, %v728
        %v730 = vpop.f32.mrb[0].mxu0
        %731 = vdwg.mxu0
        %v732 = vmul.f32 %v729, 0.35355338
        %v733 = vsel %vm154, %v732, -inf
        %734 = vmax.xlane.f32.xlu0 %v733
        %v735 = vpop.xlane.xlu0 %734
        %v736 = vsub.f32 %v732, %v735
        %v737 = vmul.f32 %v736, 1.442695
        %v738 = vpow.pop %v737
        %v739 = vsel %vm154, %v738, 0.0
        %740 = vadd.xlane.f32.xlu0 %v739
        %v741 = vpop.xlane.xlu0 %740
        %v742 = vrcp.pop %v741
        %v743 = vmul.f32 %v738, %v742
        %s744 = scalar_lea.vmem %s141, 24 [#allocation2]
        %745 = vst.msk [vmem:[%s744] sm:$0xff] %vm154, %v743
        %746 = vrot.lane.b32.xlu0 %v150, 40
        %v747 = vpop.permute.xlu0 %746
        %v750 = vsel %vm154, %v743, 0
        %752 = vmatprep.subr.mxu0 0.0
        %753 = vmatpush1.msra.mxu0 %v747
        %754 = vmatprep.subr.mxu0 0.0
        %755 = vmatpush1.msra.mxu0 0.0
        %756 = vmatprep.subr.mxu0 0.0
        %757 = vmatpush1.msra.mxu0 0.0
        %758 = vmatprep.subr.mxu0 0.0
        %759 = vmatpush1.msra.mxu0 0.0
        %760 = vmatprep.subr.mxu0 0.0
        %761 = vmatpush1.msra.mxu0 0.0
        %762 = vmatprep.subr.mxu0 0.0
        %763 = vmatpush1.msra.mxu0 0.0
        %764 = vmatprep.subr.mxu0 0.0
        %765 = vmatpush1.msra.mxu0 0.0
        %766 = vmatprep.subr.mxu0 0.0
        %767 = vmatpush1.msra.mxu0 0.0
        %768 = vmatprep.subr.mxu0 0.0
        %769 = vmatpush1.msra.mxu0 0.0
        %770 = vmatprep.subr.mxu0 0.0
        %771 = vmatpush1.msra.mxu0 0.0
        %772 = vmatprep.subr.mxu0 0.0
        %773 = vmatpush1.msra.mxu0 0.0
        %774 = vmatprep.subr.mxu0 0.0
        %775 = vmatpush1.msra.mxu0 0.0
        %776 = vmatprep.subr.mxu0 0.0
        %777 = vmatpush1.msra.mxu0 0.0
        %778 = vmatprep.subr.mxu0 0.0
        %779 = vmatpush1.msra.mxu0 0.0
        %780 = vmatprep.subr.mxu0 0.0
        %781 = vmatpush1.msra.mxu0 0.0
        %782 = vmatprep.subr.mxu0 0.0
        %783 = vmatpush1.msra.mxu0 0.0
        %784 = vmatprep.subr.mxu0 0.0
        %785 = vmatpush1.msra.mxu0 0.0
        %786 = vmatprep.subr.mxu0 0.0
        %787 = vmatpush1.msra.mxu0 0.0
        %788 = vmatprep.subr.mxu0 0.0
        %789 = vmatpush1.msra.mxu0 0.0
        %790 = vmatprep.subr.mxu0 0.0
        %791 = vmatpush1.msra.mxu0 0.0
        %792 = vmatprep.subr.mxu0 0.0
        %793 = vmatpush1.msra.mxu0 0.0
        %794 = vmatprep.subr.mxu0 0.0
        %795 = vmatpush1.msra.mxu0 0.0
        %796 = vmatprep.subr.mxu0 0.0
        %797 = vmatpush1.msra.mxu0 0.0
        %798 = vmatprep.subr.mxu0 0.0
        %799 = vmatpush1.msra.mxu0 0.0
        %800 = vmatprep.subr.mxu0 0.0
        %801 = vmatpush1.msra.mxu0 0.0
        %802 = vmatprep.subr.mxu0 0.0
        %803 = vmatpush1.msra.mxu0 0.0
        %804 = vmatprep.subr.mxu0 0.0
        %805 = vmatpush1.msra.mxu0 0.0
        %806 = vmatprep.subr.mxu0 0.0
        %807 = vmatpush1.msra.mxu0 0.0
        %808 = vmatprep.subr.mxu0 0.0
        %809 = vmatpush1.msra.mxu0 0.0
        %810 = vmatprep.subr.mxu0 0.0
        %811 = vmatpush1.msra.mxu0 0.0
        %812 = vmatprep.subr.mxu0 0.0
        %813 = vmatpush1.msra.mxu0 0.0
        %814 = vmatprep.subr.mxu0 0.0
        %815 = vmatpush1.msra.mxu0 0.0
        %816 = vmatprep.mubr.f32.mxu0 0.0
        %817 = vmatmul.mubr.f32.gmra.mrb[0].mxu0 %v750
        %v818 = vpop.f32.mrb[0].mxu0
        %v819 = vadd.f32 0.0, %v818
        %v820 = vpop.f32.mrb[0].mxu0
        %821 = vdwg.mxu0
        %823 = vrot.lane.b32.xlu0 %v483, 8
        %v824 = vpop.permute.xlu0 %823
        %827 = vrot.lane.b32.xlu0 %v651, 16
        %v828 = vpop.permute.xlu0 %827
        %831 = vrot.lane.b32.xlu0 %v819, 24
        %v832 = vpop.permute.xlu0 %831
        %v834 = vsel %vm154, %v315, %v824
        %vm835 = vcmask 130048
        %v836 = vsel %vm835, %v834, %v828
        %vm837 = vcmask 195584
        %v838 = vsel %vm837, %v836, %v832
        %vm839 = vcmask 261120
        %840 = vst.msk [vmem:[%s149] sm:$0xff] %vm839, %v838
        %p841 = scmp.lt.s32.totalorder %s17, 1
        %s842 = scalar_select %p841, %s17, 1
        %s843 = smul.addr %s842, 8
        %s844 = scalar_lea.vmem %s1, %s843
        %s845 = sand.u32 %s77, 1
        %s846 = scalar_lea.sflag [#allocation3], %s845
        %s847 = sand.u32 %s77, 1
        %s848 = smul.addr %s847, 32
        %s849 = scalar_lea.vmem [#allocation2], %s848
        // Predicated region
        $region25: #{transformer_encoder_layer.5} parent=23 // pred_check
          %p850 = pneg %p61
        $region26: #{transformer_encoder_layer.5} parent=23 // pred_check_branch
          %852 = sbr.rel (%p850) target = $region28
        $region27: #{transformer_encoder_layer.5} parent=23 // pred_region
          _
        $region28: #{transformer_encoder_layer.5} parent=23 // pred_fallthru
          _
        // Predicated region
        $region29: #{transformer_encoder_layer.5} parent=23 // pred_check
          %p853 = pneg %p87
        $region30: #{transformer_encoder_layer.5} parent=23 // pred_check_branch
          %855 = sbr.rel (%p853) target = $region32
        $region31: #{transformer_encoder_layer.5} parent=23 // pred_region
          %s857 = ssub.s32 512, 512
          %858 = vsyncadd %s846, %s857
          %s859 = smul.addr %s17, 4
          %s860 = smul.addr %s859, 128
          %s861 = scalar_lea.hbm %s2, %s860
          %s862 = sshll.u32 %s849, 4
          %s863 = int_to_ptr.vmem [resolvable:$true] %s862
          %868 = dma.vmem_to_hbm [thread:$0]  %s863, 512, %s861, %s846, 128, 128, 8
        $region32: #{transformer_encoder_layer.5} parent=23 // pred_fallthru
          _
      $region24: #{transformer_encoder_layer.5} parent=5 // pred_fallthru
        _
      %p869 = scmp.le.s32.totalorder 2, %s12
      // Predicated region
      $region33: #{transformer_encoder_layer.5} parent=5 // pred_check
        %p870 = pneg %p869
      $region34: #{transformer_encoder_layer.5} parent=5 // pred_check_branch
        %872 = sbr.rel (%p870) target = $region36
      $region35: #{transformer_encoder_layer.5} parent=5 // pred_region
        %s873 = ssub.s32 %s12, 2
        // Predicated region
        $region37: #{transformer_encoder_layer.5} parent=35 // pred_check
          %p874 = pneg %p67
        $region38: #{transformer_encoder_layer.5} parent=35 // pred_check_branch
          %876 = sbr.rel (%p874) target = $region40
        $region39: #{transformer_encoder_layer.5} parent=35 // pred_region
          %p877 = scmp.lt.s32.totalorder %s18, 1
          %s878 = scalar_select %p877, %s18, 1
          %s879 = smul.addr %s878, 8
          %s880 = scalar_lea.vmem %s1, %s879
        $region40: #{transformer_encoder_layer.5} parent=35 // pred_fallthru
          _
        // Predicated region
        $region41: #{transformer_encoder_layer.5} parent=35 // pred_check
          %p881 = pneg %p93
        $region42: #{transformer_encoder_layer.5} parent=35 // pred_check_branch
          %883 = sbr.rel (%p881) target = $region44
        $region43: #{transformer_encoder_layer.5} parent=35 // pred_region
          %s884 = sand.u32 %s78, 1
          %s885 = scalar_lea.sflag [#allocation3], %s884
          %s886 = sand.u32 %s78, 1
          %s887 = smul.addr %s886, 32
          %s888 = scalar_lea.vmem [#allocation2], %s887
          %889 = dma.done %s885, 512
        $region44: #{transformer_encoder_layer.5} parent=35 // pred_fallthru
          _
      $region36: #{transformer_encoder_layer.5} parent=5 // pred_fallthru
        _
    $region6: #{transformer_encoder_layer.5} parent=1 // loop_footer
      %s16 = sadd.s32 1, %s12
    $region7: #{transformer_encoder_layer.5} parent=1 // loop_footer_branch
      %11 = sbr.rel target = $region3
    $region8: #{transformer_encoder_layer.5} parent=1 // loop_exit
      _
    %890 = vsyncpa [#allocation3], 1
    %s891 = scalar_lea.sflag [#allocation3], 1
    %892 = vsyncpa %s891, 1

// kernel: transformer_encoder_layer.7
$region0: #{transformer_encoder_layer.7}
  #allocation0 [shape = 'u32[]', space=smem, size = 0x4, offset = 0x4, fixed_abs, tag = 'smem constant byte address 0x4 - core index']
  #allocation1 [shape = 'u32[144,128]{1,0:T(1,128)}', space=vmem, size = 0x12000, scoped, tag = 'internal scratch']
  #allocation2 [shape = 'f32[8,32]{1,0:T(8,128)}', space=vmem, size = 0x1000, scoped, tag = 'scratch operand']
  %s0 = inlined_call_operand.vmem [shape: f32[16,32], index: 0, kind: input, shape index: {}]
  %s1 = inlined_call_operand.vmem [shape: f32[32,64], index: 1, kind: input, shape index: {}]
  %s2 = inlined_call_operand.vmem [shape: f32[1,64], index: 2, kind: input, shape index: {}]
  %s3 = inlined_call_operand.vmem [shape: f32[64,32], index: 3, kind: input, shape index: {}]
  %s4 = inlined_call_operand.vmem [shape: f32[1,32], index: 4, kind: input, shape index: {}]
  %s5 = inlined_call_operand.vmem [shape: f32[1,32], index: 5, kind: input, shape index: {}]
  %s6 = inlined_call_operand.vmem [shape: f32[1,32], index: 6, kind: input, shape index: {}]
  %s7 = inlined_call_operand.hbm [shape: f32[16,32], index: 7, kind: output, shape index: {}]
  %s8 = sld [smem:[#allocation0]]
  $region69: #{transformer_encoder_layer.7} parent=0
    _
  %s10 = ssub.s32 1, %s8
  %s11 = scalar_select 0, %s10, %s8
  $region1: #{transformer_encoder_layer.7} parent=0
    #allocation3 [shape = 'u8[8192]{0}', space=vmem, size = 0x2000, scoped, tag = 'output window, operand 0']
    #allocation4 [shape = 's32[2]{0}', space=sflag, size = 0x8, scoped, tag = 'scoped memory for transformer_encoder_layer.7']
    %12 = vsyncpa [#allocation4], 0
    %s13 = scalar_lea.sflag [#allocation4], 1
    %14 = vsyncpa %s13, 0
    loop: start=0, step=1, limit=4
    $region2: #{transformer_encoder_layer.7} parent=1 // loop_pre_header
      _
    $region3: #{transformer_encoder_layer.7} parent=1 // loop_header
      %s16 = sphi 0, %s20
      %p17 = scmp.ge.s32.totalorder %s16, 4
      %s23 = sphi 0, %s35
      %s24 = sphi 0, %s31
      %s25 = sphi 0, %s23
      %s26 = sphi 0, %s24
      %s27 = sphi 0, %s25
      %s28 = sphi 0, %s26
      %s38 = sphi 0, %s40
      %s41 = sphi 0, %s38
      %s42 = sphi 0, %s41
      %s58 = sphi 0, %s42
      %s64 = sphi 0, %s66
      %s67 = sphi 0, %s64
      %s68 = sphi 0, %s67
      %s84 = sphi 0, %s68
      %s90 = sphi 0, %s92
      %s93 = sphi 0, %s90
      %s94 = sphi 0, %s93
      %s110 = sphi 0, %s94
      %s116 = sphi 0, %s118
      %s119 = sphi 0, %s116
      %s120 = sphi 0, %s119
      %s136 = sphi 0, %s120
      %s140 = sphi 0, %s140
      %s142 = sphi 0, %s140
      %s143 = sphi 0, %s142
      %s157 = sphi 0, %s143
      %s161 = sphi 0, %s161
      %s163 = sphi 0, %s161
      %s164 = sphi 0, %s163
      %s178 = sphi 0, %s164
      %s182 = sphi 0, %s182
      %s184 = sphi 0, %s182
      %s185 = sphi 0, %s184
      %s199 = sphi 0, %s185
      %s205 = sphi 0, %s207
      %s208 = sphi 0, %s205
      %s209 = sphi 0, %s208
      %s225 = sphi 0, %s209
    $region4: #{transformer_encoder_layer.7} parent=1 // loop_header_branch
      %19 = sbr.rel (%p17) target = $region8
    $region5: #{transformer_encoder_layer.7} parent=1 // loop_body
      %s21 = ssub.s32 %s16, 1
      %s22 = ssub.s32 %s16, 2
      %s29 = sadd.s32 1, %s24
      %p30 = scmp.ge.s32.totalorder %s29, 1
      %s31 = scalar_select %p30, 0, %s29
      %s32 = sadd.s32 1, %s23
      %s33 = scalar_select %p30, %s32, %s23
      %p34 = scmp.ge.s32.totalorder %s33, 2
      %s35 = scalar_select %p34, 0, %s33
      %s36 = ssub.s32 %s23, %s35
      %p37 = scmp.eq.s32.totalorder %s36, 0
      %s39 = sadd.s32 %s38, 1
      %s40 = scalar_select %p37, %s38, %s39
      %p43 = pneg %p37
      %p44 = scmp.eq.s32.totalorder %s16, 1
      %p45 = por %p43, %p44
      %p46 = scmp.ne.s32.totalorder %s38, %s41
      %p47 = scmp.eq.s32.totalorder %s16, 0
      %p48 = por %p46, %p47
      %p49 = scmp.ne.s32.totalorder %s38, %s41
      %p50 = scmp.eq.s32.totalorder %s21, 1
      %p51 = por %p49, %p50
      %p52 = scmp.ne.s32.totalorder %s41, %s42
      %p53 = scmp.eq.s32.totalorder %s21, 0
      %p54 = por %p52, %p53
      %p55 = scmp.ne.s32.totalorder %s41, %s42
      %p56 = scmp.eq.s32.totalorder %s22, 1
      %p57 = por %p55, %p56
      %p59 = scmp.ne.s32.totalorder %s42, %s58
      %p60 = scmp.eq.s32.totalorder %s22, 0
      %p61 = por %p59, %p60
      %s62 = ssub.s32 %s24, %s31
      %p63 = scmp.eq.s32.totalorder %s62, 0
      %s65 = sadd.s32 %s64, 1
      %s66 = scalar_select %p63, %s64, %s65
      %p69 = pneg %p63
      %p70 = scmp.eq.s32.totalorder %s16, 1
      %p71 = por %p69, %p70
      %p72 = scmp.ne.s32.totalorder %s64, %s67
      %p73 = scmp.eq.s32.totalorder %s16, 0
      %p74 = por %p72, %p73
      %p75 = scmp.ne.s32.totalorder %s64, %s67
      %p76 = scmp.eq.s32.totalorder %s21, 1
      %p77 = por %p75, %p76
      %p78 = scmp.ne.s32.totalorder %s67, %s68
      %p79 = scmp.eq.s32.totalorder %s21, 0
      %p80 = por %p78, %p79
      %p81 = scmp.ne.s32.totalorder %s67, %s68
      %p82 = scmp.eq.s32.totalorder %s22, 1
      %p83 = por %p81, %p82
      %p85 = scmp.ne.s32.totalorder %s68, %s84
      %p86 = scmp.eq.s32.totalorder %s22, 0
      %p87 = por %p85, %p86
      %s88 = ssub.s32 %s24, %s31
      %p89 = scmp.eq.s32.totalorder %s88, 0
      %s91 = sadd.s32 %s90, 1
      %s92 = scalar_select %p89, %s90, %s91
      %p95 = pneg %p89
      %p96 = scmp.eq.s32.totalorder %s16, 1
      %p97 = por %p95, %p96
      %p98 = scmp.ne.s32.totalorder %s90, %s93
      %p99 = scmp.eq.s32.totalorder %s16, 0
      %p100 = por %p98, %p99
      %p101 = scmp.ne.s32.totalorder %s90, %s93
      %p102 = scmp.eq.s32.totalorder %s21, 1
      %p103 = por %p101, %p102
      %p104 = scmp.ne.s32.totalorder %s93, %s94
      %p105 = scmp.eq.s32.totalorder %s21, 0
      %p106 = por %p104, %p105
      %p107 = scmp.ne.s32.totalorder %s93, %s94
      %p108 = scmp.eq.s32.totalorder %s22, 1
      %p109 = por %p107, %p108
      %p111 = scmp.ne.s32.totalorder %s94, %s110
      %p112 = scmp.eq.s32.totalorder %s22, 0
      %p113 = por %p111, %p112
      %s114 = ssub.s32 %s24, %s31
      %p115 = scmp.eq.s32.totalorder %s114, 0
      %s117 = sadd.s32 %s116, 1
      %s118 = scalar_select %p115, %s116, %s117
      %p121 = pneg %p115
      %p122 = scmp.eq.s32.totalorder %s16, 1
      %p123 = por %p121, %p122
      %p124 = scmp.ne.s32.totalorder %s116, %s119
      %p125 = scmp.eq.s32.totalorder %s16, 0
      %p126 = por %p124, %p125
      %p127 = scmp.ne.s32.totalorder %s116, %s119
      %p128 = scmp.eq.s32.totalorder %s21, 1
      %p129 = por %p127, %p128
      %p130 = scmp.ne.s32.totalorder %s119, %s120
      %p131 = scmp.eq.s32.totalorder %s21, 0
      %p132 = por %p130, %p131
      %p133 = scmp.ne.s32.totalorder %s119, %s120
      %p134 = scmp.eq.s32.totalorder %s22, 1
      %p135 = por %p133, %p134
      %p137 = scmp.ne.s32.totalorder %s120, %s136
      %p138 = scmp.eq.s32.totalorder %s22, 0
      %p139 = por %p137, %p138
      %s141 = sadd.s32 %s140, 1
      %p144 = scmp.eq.s32.totalorder %s16, 1
      %p145 = scmp.ne.s32.totalorder %s140, %s142
      %p146 = scmp.eq.s32.totalorder %s16, 0
      %p147 = por %p145, %p146
      %p148 = scmp.ne.s32.totalorder %s140, %s142
      %p149 = scmp.eq.s32.totalorder %s21, 1
      %p150 = por %p148, %p149
      %p151 = scmp.ne.s32.totalorder %s142, %s143
      %p152 = scmp.eq.s32.totalorder %s21, 0
      %p153 = por %p151, %p152
      %p154 = scmp.ne.s32.totalorder %s142, %s143
      %p155 = scmp.eq.s32.totalorder %s22, 1
      %p156 = por %p154, %p155
      %p158 = scmp.ne.s32.totalorder %s143, %s157
      %p159 = scmp.eq.s32.totalorder %s22, 0
      %p160 = por %p158, %p159
      %s162 = sadd.s32 %s161, 1
      %p165 = scmp.eq.s32.totalorder %s16, 1
      %p166 = scmp.ne.s32.totalorder %s161, %s163
      %p167 = scmp.eq.s32.totalorder %s16, 0
      %p168 = por %p166, %p167
      %p169 = scmp.ne.s32.totalorder %s161, %s163
      %p170 = scmp.eq.s32.totalorder %s21, 1
      %p171 = por %p169, %p170
      %p172 = scmp.ne.s32.totalorder %s163, %s164
      %p173 = scmp.eq.s32.totalorder %s21, 0
      %p174 = por %p172, %p173
      %p175 = scmp.ne.s32.totalorder %s163, %s164
      %p176 = scmp.eq.s32.totalorder %s22, 1
      %p177 = por %p175, %p176
      %p179 = scmp.ne.s32.totalorder %s164, %s178
      %p180 = scmp.eq.s32.totalorder %s22, 0
      %p181 = por %p179, %p180
      %s183 = sadd.s32 %s182, 1
      %p186 = scmp.eq.s32.totalorder %s16, 1
      %p187 = scmp.ne.s32.totalorder %s182, %s184
      %p188 = scmp.eq.s32.totalorder %s16, 0
      %p189 = por %p187, %p188
      %p190 = scmp.ne.s32.totalorder %s182, %s184
      %p191 = scmp.eq.s32.totalorder %s21, 1
      %p192 = por %p190, %p191
      %p193 = scmp.ne.s32.totalorder %s184, %s185
      %p194 = scmp.eq.s32.totalorder %s21, 0
      %p195 = por %p193, %p194
      %p196 = scmp.ne.s32.totalorder %s184, %s185
      %p197 = scmp.eq.s32.totalorder %s22, 1
      %p198 = por %p196, %p197
      %p200 = scmp.ne.s32.totalorder %s185, %s199
      %p201 = scmp.eq.s32.totalorder %s22, 0
      %p202 = por %p200, %p201
      %s203 = ssub.s32 %s23, %s35
      %p204 = scmp.eq.s32.totalorder %s203, 0
      %s206 = sadd.s32 %s205, 1
      %s207 = scalar_select %p204, %s205, %s206
      %p210 = pneg %p204
      %p211 = scmp.eq.s32.totalorder %s16, 1
      %p212 = por %p210, %p211
      %p213 = scmp.ne.s32.totalorder %s205, %s208
      %p214 = scmp.eq.s32.totalorder %s16, 0
      %p215 = por %p213, %p214
      %p216 = scmp.ne.s32.totalorder %s205, %s208
      %p217 = scmp.eq.s32.totalorder %s21, 1
      %p218 = por %p216, %p217
      %p219 = scmp.ne.s32.totalorder %s208, %s209
      %p220 = scmp.eq.s32.totalorder %s21, 0
      %p221 = por %p219, %p220
      %p222 = scmp.ne.s32.totalorder %s208, %s209
      %p223 = scmp.eq.s32.totalorder %s22, 1
      %p224 = por %p222, %p223
      %p226 = scmp.ne.s32.totalorder %s209, %s225
      %p227 = scmp.eq.s32.totalorder %s22, 0
      %p228 = por %p226, %p227
      %p229 = scmp.le.s32.totalorder 1, %s16
      %p230 = scmp.lt.s32.totalorder %s16, 3
      %p231 = pnand %p229, %p230
      %p232 = pneg %p231
      // Predicated region
      $region9: #{transformer_encoder_layer.7} parent=5 // pred_check
        _
      $region10: #{transformer_encoder_layer.7} parent=5 // pred_check_branch
        %234 = sbr.rel (%p231) target = $region12
      $region11: #{transformer_encoder_layer.7} parent=5 // pred_region
        %s235 = ssub.s32 %s16, 1
        // Predicated region
        $region13: #{transformer_encoder_layer.7} parent=11 // pred_check
          %p236 = pneg %p80
        $region14: #{transformer_encoder_layer.7} parent=11 // pred_check_branch
          %238 = sbr.rel (%p236) target = $region16
        $region15: #{transformer_encoder_layer.7} parent=11 // pred_region
          %p239 = scmp.lt.s32.totalorder %s26, 0
          %s240 = scalar_select %p239, %s26, 0
          %s241 = smul.addr %s240, 8
          %s242 = scalar_lea.vmem %s1, %s241
        $region16: #{transformer_encoder_layer.7} parent=11 // pred_fallthru
          _
        // Predicated region
        $region17: #{transformer_encoder_layer.7} parent=11 // pred_check
          %p243 = pneg %p106
        $region18: #{transformer_encoder_layer.7} parent=11 // pred_check_branch
          %245 = sbr.rel (%p243) target = $region20
        $region19: #{transformer_encoder_layer.7} parent=11 // pred_region
          %p246 = scmp.lt.s32.totalorder %s26, 0
          %s247 = scalar_select %p246, %s26, 0
          %s248 = scalar_lea.vmem %s2, %s247
        $region20: #{transformer_encoder_layer.7} parent=11 // pred_fallthru
          _
        // Predicated region
        $region21: #{transformer_encoder_layer.7} parent=11 // pred_check
          %p249 = pneg %p132
        $region22: #{transformer_encoder_layer.7} parent=11 // pred_check_branch
          %251 = sbr.rel (%p249) target = $region24
        $region23: #{transformer_encoder_layer.7} parent=11 // pred_region
          %s252 = smul.u32 8, %s26
          %p253 = scmp.lt.s32.totalorder %s252, 7
          %s254 = scalar_select %p253, %s252, 7
          %s255 = smul.addr %s254, 8
          %s256 = scalar_lea.vmem %s3, %s255
          %s257 = smul.u32 8, %s26
        $region24: #{transformer_encoder_layer.7} parent=11 // pred_fallthru
          _
        // Predicated region
        $region25: #{transformer_encoder_layer.7} parent=11 // pred_check
          %p258 = pneg %p153
        $region26: #{transformer_encoder_layer.7} parent=11 // pred_check_branch
          %260 = sbr.rel (%p258) target = $region28
        $region27: #{transformer_encoder_layer.7} parent=11 // pred_region
          _
        $region28: #{transformer_encoder_layer.7} parent=11 // pred_fallthru
          _
        // Predicated region
        $region29: #{transformer_encoder_layer.7} parent=11 // pred_check
          %p261 = pneg %p174
        $region30: #{transformer_encoder_layer.7} parent=11 // pred_check_branch
          %263 = sbr.rel (%p261) target = $region32
        $region31: #{transformer_encoder_layer.7} parent=11 // pred_region
          _
        $region32: #{transformer_encoder_layer.7} parent=11 // pred_fallthru
          _
        // Predicated region
        $region33: #{transformer_encoder_layer.7} parent=11 // pred_check
          %p264 = pneg %p195
        $region34: #{transformer_encoder_layer.7} parent=11 // pred_check_branch
          %266 = sbr.rel (%p264) target = $region36
        $region35: #{transformer_encoder_layer.7} parent=11 // pred_region
          _
        $region36: #{transformer_encoder_layer.7} parent=11 // pred_fallthru
          _
      $region12: #{transformer_encoder_layer.7} parent=5 // pred_fallthru
        _
      %p267 = scmp.lt.s32.totalorder %s16, 2
      // Predicated region
      $region37: #{transformer_encoder_layer.7} parent=5 // pred_check
        %p268 = pneg %p267
      $region38: #{transformer_encoder_layer.7} parent=5 // pred_check_branch
        %270 = sbr.rel (%p268) target = $region40
      $region39: #{transformer_encoder_layer.7} parent=5 // pred_region
        // Predicated region
        $region41: #{transformer_encoder_layer.7} parent=39 // pred_check
          %p271 = pneg %p48
        $region42: #{transformer_encoder_layer.7} parent=39 // pred_check_branch
          %273 = sbr.rel (%p271) target = $region44
        $region43: #{transformer_encoder_layer.7} parent=39 // pred_region
          %p274 = scmp.lt.s32.totalorder %s23, 1
          %s275 = scalar_select %p274, %s23, 1
          %s276 = smul.addr %s275, 8
          %s277 = scalar_lea.vmem %s0, %s276
        $region44: #{transformer_encoder_layer.7} parent=39 // pred_fallthru
          _
      $region40: #{transformer_encoder_layer.7} parent=5 // pred_fallthru
        _
      %p278 = scmp.le.s32.totalorder 1, %s16
      %p279 = scmp.lt.s32.totalorder %s16, 3
      %p280 = pnand %p278, %p279
      %p281 = pneg %p280
      // Predicated region
      $region45: #{transformer_encoder_layer.7} parent=5 // pred_check
        _
      $region46: #{transformer_encoder_layer.7} parent=5 // pred_check_branch
        %283 = sbr.rel (%p280) target = $region48
      $region47: #{transformer_encoder_layer.7} parent=5 // pred_region
        %s284 = ssub.s32 %s16, 1
        %p285 = scmp.lt.s32.totalorder %s25, 1
        %s286 = scalar_select %p285, %s25, 1
        %s287 = smul.addr %s286, 8
        %s288 = scalar_lea.vmem %s0, %s287
        %p289 = pneg %p54
        %p290 = pneg %p51
        %p291 = scmp.lt.s32.totalorder %s26, 0
        %s292 = scalar_select %p291, %s26, 0
        %s293 = smul.addr %s292, 8
        %s294 = scalar_lea.vmem %s1, %s293
        %p295 = pneg %p80
        %p296 = pneg %p77
        %p297 = scmp.lt.s32.totalorder %s26, 0
        %s298 = scalar_select %p297, %s26, 0
        %s299 = scalar_lea.vmem %s2, %s298
        %p300 = pneg %p106
        %p301 = pneg %p103
        %s302 = smul.u32 8, %s26
        %p303 = scmp.lt.s32.totalorder %s302, 7
        %s304 = scalar_select %p303, %s302, 7
        %s305 = smul.addr %s304, 8
        %s306 = scalar_lea.vmem %s3, %s305
        %p307 = pneg %p132
        %p308 = pneg %p129
        %p309 = pneg %p153
        %p310 = pneg %p150
        %p311 = pneg %p174
        %p312 = pneg %p171
        %p313 = pneg %p195
        %p314 = pneg %p192
        %p315 = pneg %p221
        %p316 = pneg %p218
        %s317 = sand.u32 %s208, 1
        %s318 = scalar_lea.sflag [#allocation4], %s317
        %s319 = sand.u32 %s208, 1
        %s320 = smul.addr %s319, 8
        %s321 = scalar_lea.vmem [#allocation3], %s320
        %p322 = scmp.lt.s32.totalorder %s25, 1
        %s323 = scalar_select %p322, %s25, 1
        %s324 = smul.addr %s323, 8
        %s325 = scalar_lea.vmem %s0, %s324
        %p326 = scmp.lt.s32.totalorder %s26, 0
        %s327 = scalar_select %p326, %s26, 0
        %s328 = smul.addr %s327, 8
        %s329 = scalar_lea.vmem %s1, %s328
        %p330 = scmp.lt.s32.totalorder %s26, 0
        %s331 = scalar_select %p330, %s26, 0
        %s332 = scalar_lea.vmem %s2, %s331
        %s333 = smul.u32 8, %s26
        %p334 = scmp.lt.s32.totalorder %s333, 7
        %s335 = scalar_select %p334, %s333, 7
        %s336 = smul.addr %s335, 8
        %s337 = scalar_lea.vmem %s3, %s336
        %s338 = smul.u32 8, %s26
        %p339 = scmp.eq.s32.totalorder %s26, 0
        // Predicated region
        $region49: #{transformer_encoder_layer.7} parent=47 // pred_check
          %p340 = pneg %p339
        $region50: #{transformer_encoder_layer.7} parent=47 // pred_check_branch
          %342 = sbr.rel (%p340) target = $region52
        $region51: #{transformer_encoder_layer.7} parent=47 // pred_region
          %v343 = vld [vmem:[%s4] sm:$0x1]
          %v345 = vlaneseq
          %v346 = vshrl.u32 %v345, 7
          %v347 = vsub.s32 0, %v346
          %v348 = vrot.slane %v343, %v347
          %vm350 = vcmask 261120
          %351 = vst.msk [vmem:[#allocation2] sm:$0xff] %vm350, %v348
        $region52: #{transformer_encoder_layer.7} parent=47 // pred_fallthru
          _
        %v352 = vld [vmem:[%s325] sm:$0xff]
        %v353 = vld [vmem:[%s329] sm:$0xff]
        %v354 = vld [vmem:[%s329 + $0x8] sm:$0xff]
        %v355 = vld [vmem:[%s329 + $0x10] sm:$0xff]
        %v356 = vld [vmem:[%s329 + $0x18] sm:$0xff]
        %v357 = vld [vmem:[%s332] sm:$0x1]
        %v359 = vlaneseq
        %v360 = vshrl.u32 %v359, 7
        %v361 = vsub.s32 0, %v360
        %v362 = vrot.slane %v357, %v361
        %vm364 = vcmask 261120
        %v366 = vsel %vm364, %v352, 0
        %368 = vmatprep.subr.mxu0 0.0
        %369 = vmatpush1.msra.mxu0 %v353
        %370 = vmatprep.subr.mxu0 0.0
        %371 = vmatpush1.msra.mxu0 %v354
        %372 = vmatprep.subr.mxu0 0.0
        %373 = vmatpush1.msra.mxu0 %v355
        %374 = vmatprep.subr.mxu0 0.0
        %375 = vmatpush1.msra.mxu0 %v356
        %376 = vmatprep.subr.mxu0 0.0
        %377 = vmatpush1.msra.mxu0 0.0
        %378 = vmatprep.subr.mxu0 0.0
        %379 = vmatpush1.msra.mxu0 0.0
        %380 = vmatprep.subr.mxu0 0.0
        %381 = vmatpush1.msra.mxu0 0.0
        %382 = vmatprep.subr.mxu0 0.0
        %383 = vmatpush1.msra.mxu0 0.0
        %384 = vmatprep.subr.mxu0 0.0
        %385 = vmatpush1.msra.mxu0 0.0
        %386 = vmatprep.subr.mxu0 0.0
        %387 = vmatpush1.msra.mxu0 0.0
        %388 = vmatprep.subr.mxu0 0.0
        %389 = vmatpush1.msra.mxu0 0.0
        %390 = vmatprep.subr.mxu0 0.0
        %391 = vmatpush1.msra.mxu0 0.0
        %392 = vmatprep.subr.mxu0 0.0
        %393 = vmatpush1.msra.mxu0 0.0
        %394 = vmatprep.subr.mxu0 0.0
        %395 = vmatpush1.msra.mxu0 0.0
        %396 = vmatprep.subr.mxu0 0.0
        %397 = vmatpush1.msra.mxu0 0.0
        %398 = vmatprep.subr.mxu0 0.0
        %399 = vmatpush1.msra.mxu0 0.0
        %400 = vmatprep.subr.mxu0 0.0
        %401 = vmatpush1.msra.mxu0 0.0
        %402 = vmatprep.subr.mxu0 0.0
        %403 = vmatpush1.msra.mxu0 0.0
        %404 = vmatprep.subr.mxu0 0.0
        %405 = vmatpush1.msra.mxu0 0.0
        %406 = vmatprep.subr.mxu0 0.0
        %407 = vmatpush1.msra.mxu0 0.0
        %408 = vmatprep.subr.mxu0 0.0
        %409 = vmatpush1.msra.mxu0 0.0
        %410 = vmatprep.subr.mxu0 0.0
        %411 = vmatpush1.msra.mxu0 0.0
        %412 = vmatprep.subr.mxu0 0.0
        %413 = vmatpush1.msra.mxu0 0.0
        %414 = vmatprep.subr.mxu0 0.0
        %415 = vmatpush1.msra.mxu0 0.0
        %416 = vmatprep.subr.mxu0 0.0
        %417 = vmatpush1.msra.mxu0 0.0
        %418 = vmatprep.subr.mxu0 0.0
        %419 = vmatpush1.msra.mxu0 0.0
        %420 = vmatprep.subr.mxu0 0.0
        %421 = vmatpush1.msra.mxu0 0.0
        %422 = vmatprep.subr.mxu0 0.0
        %423 = vmatpush1.msra.mxu0 0.0
        %424 = vmatprep.subr.mxu0 0.0
        %425 = vmatpush1.msra.mxu0 0.0
        %426 = vmatprep.subr.mxu0 0.0
        %427 = vmatpush1.msra.mxu0 0.0
        %428 = vmatprep.subr.mxu0 0.0
        %429 = vmatpush1.msra.mxu0 0.0
        %430 = vmatprep.subr.mxu0 0.0
        %431 = vmatpush1.msra.mxu0 0.0
        %432 = vmatprep.mubr.f32.mxu0 0.0
        %433 = vmatmul.mubr.f32.gmra.mrb[0].mxu0 %v366
        %v434 = vpop.f32.mrb[0].mxu0
        %v435 = vadd.f32 %v362, %v434
        %v436 = vpop.f32.mrb[0].mxu0
        %437 = vdwg.mxu0
        %v438 = vmax.f32 %v435, 0.0
        %v439 = vld [vmem:[#allocation2] sm:$0xff]
        %v440 = vld [vmem:[%s337] sm:$0xff]
        %v441 = vld [vmem:[%s337 + $0x8] sm:$0xff]
        %v442 = vld [vmem:[%s337 + $0x10] sm:$0xff]
        %v443 = vld [vmem:[%s337 + $0x18] sm:$0xff]
        %v444 = vld [vmem:[%s337 + $0x20] sm:$0xff]
        %v445 = vld [vmem:[%s337 + $0x28] sm:$0xff]
        %v446 = vld [vmem:[%s337 + $0x30] sm:$0xff]
        %v447 = vld [vmem:[%s337 + $0x38] sm:$0xff]
        %vm448 = vcmask 523264
        %v450 = vsel %vm448, %v438, 0
        %452 = vmatprep.subr.mxu0 0.0
        %453 = vmatpush1.msra.mxu0 %v440
        %454 = vmatprep.subr.mxu0 0.0
        %455 = vmatpush1.msra.mxu0 %v441
        %456 = vmatprep.subr.mxu0 0.0
        %457 = vmatpush1.msra.mxu0 %v442
        %458 = vmatprep.subr.mxu0 0.0
        %459 = vmatpush1.msra.mxu0 %v443
        %460 = vmatprep.subr.mxu0 0.0
        %461 = vmatpush1.msra.mxu0 %v444
        %462 = vmatprep.subr.mxu0 0.0
        %463 = vmatpush1.msra.mxu0 %v445
        %464 = vmatprep.subr.mxu0 0.0
        %465 = vmatpush1.msra.mxu0 %v446
        %466 = vmatprep.subr.mxu0 0.0
        %467 = vmatpush1.msra.mxu0 %v447
        %468 = vmatprep.subr.mxu0 0.0
        %469 = vmatpush1.msra.mxu0 0.0
        %470 = vmatprep.subr.mxu0 0.0
        %471 = vmatpush1.msra.mxu0 0.0
        %472 = vmatprep.subr.mxu0 0.0
        %473 = vmatpush1.msra.mxu0 0.0
        %474 = vmatprep.subr.mxu0 0.0
        %475 = vmatpush1.msra.mxu0 0.0
        %476 = vmatprep.subr.mxu0 0.0
        %477 = vmatpush1.msra.mxu0 0.0
        %478 = vmatprep.subr.mxu0 0.0
        %479 = vmatpush1.msra.mxu0 0.0
        %480 = vmatprep.subr.mxu0 0.0
        %481 = vmatpush1.msra.mxu0 0.0
        %482 = vmatprep.subr.mxu0 0.0
        %483 = vmatpush1.msra.mxu0 0.0
        %484 = vmatprep.subr.mxu0 0.0
        %485 = vmatpush1.msra.mxu0 0.0
        %486 = vmatprep.subr.mxu0 0.0
        %487 = vmatpush1.msra.mxu0 0.0
        %488 = vmatprep.subr.mxu0 0.0
        %489 = vmatpush1.msra.mxu0 0.0
        %490 = vmatprep.subr.mxu0 0.0
        %491 = vmatpush1.msra.mxu0 0.0
        %492 = vmatprep.subr.mxu0 0.0
        %493 = vmatpush1.msra.mxu0 0.0
        %494 = vmatprep.subr.mxu0 0.0
        %495 = vmatpush1.msra.mxu0 0.0
        %496 = vmatprep.subr.mxu0 0.0
        %497 = vmatpush1.msra.mxu0 0.0
        %498 = vmatprep.subr.mxu0 0.0
        %499 = vmatpush1.msra.mxu0 0.0
        %500 = vmatprep.subr.mxu0 0.0
        %501 = vmatpush1.msra.mxu0 0.0
        %502 = vmatprep.subr.mxu0 0.0
        %503 = vmatpush1.msra.mxu0 0.0
        %504 = vmatprep.subr.mxu0 0.0
        %505 = vmatpush1.msra.mxu0 0.0
        %506 = vmatprep.subr.mxu0 0.0
        %507 = vmatpush1.msra.mxu0 0.0
        %508 = vmatprep.subr.mxu0 0.0
        %509 = vmatpush1.msra.mxu0 0.0
        %510 = vmatprep.subr.mxu0 0.0
        %511 = vmatpush1.msra.mxu0 0.0
        %512 = vmatprep.subr.mxu0 0.0
        %513 = vmatpush1.msra.mxu0 0.0
        %514 = vmatprep.subr.mxu0 0.0
        %515 = vmatpush1.msra.mxu0 0.0
        %516 = vmatprep.mubr.f32.mxu0 0.0
        %517 = vmatmul.mubr.f32.gmra.mrb[0].mxu0 %v450
        %v518 = vpop.f32.mrb[0].mxu0
        %v519 = vadd.f32 0.0, %v518
        %v520 = vpop.f32.mrb[0].mxu0
        %521 = vdwg.mxu0
        %v522 = vadd.f32 %v439, %v519
        %523 = vst.msk [vmem:[#allocation2] sm:$0xff] %vm364, %v522
        // Predicated region
        $region53: #{transformer_encoder_layer.7} parent=47 // pred_check
          %p524 = pneg %p339
        $region54: #{transformer_encoder_layer.7} parent=47 // pred_check_branch
          %526 = sbr.rel (%p524) target = $region56
        $region55: #{transformer_encoder_layer.7} parent=47 // pred_region
          %v527 = vld [vmem:[#allocation2] sm:$0xff]
          %v528 = vld [vmem:[%s325] sm:$0xff]
          %v529 = vadd.f32 %v527, %v528
          %v530 = vsel %vm364, %v529, 0.0
          %531 = vadd.xlane.f32.xlu0 %v530
          %v532 = vpop.xlane.xlu0 %531
          %v533 = vrcp.pop 32.0
          %v534 = vmul.f32 %v532, %v533
          %v535 = vsub.f32 %v529, %v534
          %v536 = vmul.f32 %v535, %v535
          %v537 = vsel %vm364, %v536, 0.0
          %538 = vadd.xlane.f32.xlu0 %v537
          %v539 = vpop.xlane.xlu0 %538
          %v540 = vmul.f32 %v539, %v533
          %v541 = vadd.f32 %v540, 1e-05
          %v542 = vrsqrt.pop %v541
          %v543 = vmul.f32 %v535, %v542
          %v544 = vld [vmem:[%s5] sm:$0x1]
          %v546 = vlaneseq
          %v547 = vshrl.u32 %v546, 7
          %v548 = vsub.s32 0, %v547
          %v549 = vrot.slane %v544, %v548
          %v551 = vmul.f32 %v543, %v549
          %v552 = vld [vmem:[%s6] sm:$0x1]
          %v554 = vlaneseq
          %v555 = vshrl.u32 %v554, 7
          %v556 = vsub.s32 0, %v555
          %v557 = vrot.slane %v552, %v556
          %v559 = vadd.f32 %v551, %v557
          %560 = vst.msk [vmem:[%s321] sm:$0xff] %vm364, %v559
        $region56: #{transformer_encoder_layer.7} parent=47 // pred_fallthru
          _
        %s561 = sand.u32 %s208, 1
        %s562 = scalar_lea.sflag [#allocation4], %s561
        %s563 = sand.u32 %s208, 1
        %s564 = smul.addr %s563, 8
        %s565 = scalar_lea.vmem [#allocation3], %s564
        // Predicated region
        $region57: #{transformer_encoder_layer.7} parent=47 // pred_check
          %p566 = pneg %p218
        $region58: #{transformer_encoder_layer.7} parent=47 // pred_check_branch
          %568 = sbr.rel (%p566) target = $region60
        $region59: #{transformer_encoder_layer.7} parent=47 // pred_region
          %s570 = ssub.s32 128, 128
          %571 = vsyncadd %s562, %s570
          %s572 = smul.addr %s25, 128
          %s573 = scalar_lea.hbm %s7, %s572
          %s575 = sshll.u32 %s565, 4
          %s576 = int_to_ptr.vmem [resolvable:$true] %s575
          %578 = dma.vmem_to_hbm [thread:$0]  %s576, 128, %s573, %s562
        $region60: #{transformer_encoder_layer.7} parent=47 // pred_fallthru
          _
      $region48: #{transformer_encoder_layer.7} parent=5 // pred_fallthru
        _
      %p579 = scmp.le.s32.totalorder 2, %s16
      // Predicated region
      $region61: #{transformer_encoder_layer.7} parent=5 // pred_check
        %p580 = pneg %p579
      $region62: #{transformer_encoder_layer.7} parent=5 // pred_check_branch
        %582 = sbr.rel (%p580) target = $region64
      $region63: #{transformer_encoder_layer.7} parent=5 // pred_region
        %s583 = ssub.s32 %s16, 2
        // Predicated region
        $region65: #{transformer_encoder_layer.7} parent=63 // pred_check
          %p584 = pneg %p224
        $region66: #{transformer_encoder_layer.7} parent=63 // pred_check_branch
          %586 = sbr.rel (%p584) target = $region68
        $region67: #{transformer_encoder_layer.7} parent=63 // pred_region
          %s587 = sand.u32 %s209, 1
          %s588 = scalar_lea.sflag [#allocation4], %s587
          %s589 = sand.u32 %s209, 1
          %s590 = smul.addr %s589, 8
          %s591 = scalar_lea.vmem [#allocation3], %s590
          %592 = dma.done %s588, 128
        $region68: #{transformer_encoder_layer.7} parent=63 // pred_fallthru
          _
      $region64: #{transformer_encoder_layer.7} parent=5 // pred_fallthru
        _
    $region6: #{transformer_encoder_layer.7} parent=1 // loop_footer
      %s20 = sadd.s32 1, %s16
    $region7: #{transformer_encoder_layer.7} parent=1 // loop_footer_branch
      %15 = sbr.rel target = $region3
    $region8: #{transformer_encoder_layer.7} parent=1 // loop_exit
      _
    %593 = vsyncpa [#allocation4], 1
    %s594 = scalar_lea.sflag [#allocation4], 1
    %595 = vsyncpa %s594, 1

</llo_original>
